<compile_context>
chip_gen: v5e
topology: v5e:2x2
jax: 0.10.0
libtpu: 0.0.40
codegen_flags: <defaults>
</compile_context>

<pallas_src>
import functools

import jax
import jax.numpy as jnp
from jax import lax
from jax.experimental import pallas as pl
from jax.experimental.pallas import tpu as pltpu

LN_EPS = 1e-5


def _hw_info():
    """Best-effort hardware query (VMEM capacity, TensorCores per chip)."""
    info = None
    vmem_cap = 64 * 1024 * 1024          # conservative default (v7x)
    try:
        info = pltpu.get_tpu_info()
        vmem_cap = int(info.vmem_capacity_bytes)
    except Exception:
        pass
    num_cores = 1
    if info is not None:
        for name in ("num_tensorcores", "tensorcores_per_chip",
                     "num_cores", "cores_per_chip"):
            v = getattr(info, name, None)
            if isinstance(v, int) and v > 0:
                num_cores = v
                break
    return vmem_cap, num_cores


def _conv_relu_norm(load_tap, w_ref, cb_ref, g_ref, be_ref, *, K, bb, T_pad):
    """One ConvReLUNorm layer: returns (bb*T_pad, Cout) f32.

    load_tap(k) -> (bb, T_pad, Cin) time-shifted view of the layer input in
    the matmul dtype.  The K taps are accumulated as K MXU matmuls with f32
    accumulation (no K*C lane-concat materialization).  Bias / ReLU /
    LayerNorm stay f32."""
    Cin_l = w_ref.shape[1]
    Cout = w_ref.shape[2]
    acc = None
    for k in range(K):                                   # K is tiny -> unrolled
        xk = load_tap(k).reshape(bb * T_pad, Cin_l)
        d = jnp.dot(xk, w_ref[k], preferred_element_type=jnp.float32)
        acc = d if acc is None else acc + d
    y = acc + cb_ref[...]                                # conv bias (1, Cout)
    y = jnp.maximum(y, 0.0)                              # ReLU
    # Single-pass LayerNorm statistics: the two reductions are independent.
    inv_f = 1.0 / Cout
    s = jnp.sum(y, axis=-1, keepdims=True)
    s2 = jnp.sum(y * y, axis=-1, keepdims=True)
    mean = s * inv_f
    var = jnp.maximum(s2 * inv_f - mean * mean, 0.0)
    y = (y - mean) * lax.rsqrt(var + LN_EPS)
    y = y * g_ref[...] + be_ref[...]
    # TODO(synk): dropout is identity in eval/inference mode, so it is omitted.
    return y


def temporal_predictor_kernel(x_ref, maskl_ref,
                              w1_ref, cb1_ref, g1_ref, be1_ref,
                              w2_ref, cb2_ref, g2_ref, be2_ref,
                              fcw_ref, fcb_ref,
                              out_ref, h_scr,
                              *, K, pad, halo_front, T_valid):
    bb = out_ref.shape[1]
    T_pad = out_ref.shape[2]
    Fdim = w2_ref.shape[2]

    # ---- layer 1: taps are static windows of the HBM-prepadded input block.
    h = _conv_relu_norm(lambda k: x_ref[:, pl.ds(k, T_pad), :],
                        w1_ref, cb1_ref, g1_ref, be1_ref,
                        K=K, bb=bb, T_pad=T_pad)
    h = h.reshape(bb, T_pad, Fdim)

    # Zero alignment-padding time rows (t >= T) so layer 2's taps see the same
    # zero padding at t == T as the reference ("same" conv zero padding).
    if T_valid != T_pad:
        t_idx = lax.broadcasted_iota(jnp.int32, (bb, T_pad, Fdim), 1)
        h = jnp.where(t_idx < T_valid, h, 0.0)

    # ---- stage h into a haloed VMEM scratch: halo rows zeroed (every step --
    # under megacore each core owns its own scratch), interior stored at an
    # aligned sublane offset.  Layer-2 taps are static windows of the scratch.
    if pad > 0:
        h_scr[:, pl.ds(0, halo_front), :] = jnp.zeros(
            (bb, halo_front, Fdim), h_scr.dtype)
        h_scr[:, pl.ds(halo_front + T_pad, pad), :] = jnp.zeros(
            (bb, pad, Fdim), h_scr.dtype)
    h_scr[:, pl.ds(halo_front, T_pad), :] = h.astype(h_scr.dtype)

    off0 = halo_front - pad
    h2 = _conv_relu_norm(lambda k: h_scr[:, pl.ds(off0 + k, T_pad), :],
                         w2_ref, cb2_ref, g2_ref, be2_ref,
                         K=K, bb=bb, T_pad=T_pad)
    h2 = h2.reshape(bb, T_pad, Fdim)

    # ---- Linear(F, 1) as VPU multiply + cross-lane (XLU) reduce: avoids an
    # N=1 MXU matmul and produces a lane-dense (bb, T_pad) result.
    o = jnp.sum(h2 * fcw_ref[...], axis=-1) + fcb_ref[...]     # (bb, T_pad)
    o = o * maskl_ref[0]                                        # lane-dense mask
    out_ref[0] = o.astype(out_ref.dtype)


def temporal_predictor(enc_out, enc_out_mask, params, *,
                       block_b=8, matmul_dtype=jnp.bfloat16, num_cores=None):
    """enc_out: (B, T, Cin) f32, enc_out_mask: (B, T, 1) f32 -> (B, T) f32."""
    B, T, Cin = enc_out.shape
    w1, cb1, g1, be1, w2, cb2, g2, be2, fcw, fcb = params
    K = w1.shape[0]
    pad = K // 2
    Fdim = w1.shape[-1]
    mm_bytes = jnp.dtype(matmul_dtype).itemsize

    vmem_cap, detected_cores = _hw_info()
    if num_cores is None:
        num_cores = detected_cores

    # Time padding: T_pad multiple of 8 (layout-preserving (bb,T,C)<->(bb*T,C)
    # reshapes), plus a `pad`-row zero halo folded into the HBM pad so layer-1
    # taps are pure static windows (no in-kernel concat copy).
    T_pad = pl.cdiv(T, 8) * 8
    T_halo = T_pad + 2 * pad
    halo_front = (pl.cdiv(pad, 8) * 8) if pad > 0 else 0   # aligned scratch interior

    # ---- VMEM-budget-driven batch-chunk size (bounds intermediates so tiles
    # fit v7x's 64 MiB as well as v5e/v6e's 128 MiB).
    vmem_limit = min(int(vmem_cap * 0.8), 100 * 1024 * 1024)
    weight_bytes = (K * Cin * Fdim + K * Fdim * Fdim) * mm_bytes + 8 * Fdim * 4 + 64
    per_bb = (2 * T_halo * Cin * mm_bytes                      # input tile (double-buffered)
              + 4 * T_pad * 4                                  # maskl + out tiles (dbl-buf f32)
              + (halo_front + T_pad + pad) * Fdim * mm_bytes   # h scratch
              + 6 * T_pad * Fdim * 4)                          # f32 conv/LN temporaries headroom
    budget = vmem_limit - 2 * weight_bytes - (4 << 20)
    bb_fit = max(1, budget // per_bb)
    bb = int(max(1, min(block_b, B, bb_fit)))

    # Megacore balance: only split the batch across TensorCores on multi-core
    # chips (v7x), and only when each core still gets a reasonable chunk.
    if num_cores >= 2 and B > bb:
        g_tgt = pl.cdiv(pl.cdiv(B, bb), num_cores) * num_cores
        bb_bal = pl.cdiv(B, g_tgt)
        if bb_bal >= 2:
            bb = int(bb_bal)

    B_pad = pl.cdiv(B, bb) * bb
    G = B_pad // bb

    # Pre-mask + pre-cast the dominant input once in HBM (halves its DMA for
    # bf16; numerics unchanged -- the kernel cast to the matmul dtype anyway),
    # and fold the conv halo + alignment padding into one jnp.pad.  Padded
    # batch rows produce garbage outputs but are sliced off below and never
    # mix across batch (time shifts are per batch element).
    x = (enc_out * enc_out_mask).astype(matmul_dtype)
    x = jnp.pad(x, ((0, B_pad - B), (pad, (T_pad - T) + pad), (0, 0)))

    # Lane-dense mask (T on lanes) used only for the output multiply; the
    # (B, T, 1) mask tile is not shipped to the kernel at all.
    mask_lane = jnp.pad(enc_out_mask[..., 0].astype(jnp.float32),
                        ((0, B_pad - B), (0, T_pad - T))).reshape(G, bb, T_pad)

    w1m = w1.astype(matmul_dtype)                      # (K, Cin, F) per-tap weights
    w2m = w2.astype(matmul_dtype)                      # (K, F, F)
    fcw_row = fcw.reshape(1, Fdim).astype(jnp.float32)

    weights = (w1m, cb1, g1, be1, w2m, cb2, g2, be2, fcw_row, fcb)

    def full_spec(shape):
        nd = len(shape)
        return pl.BlockSpec(shape, lambda g, _nd=nd: (0,) * _nd)

    kernel = functools.partial(temporal_predictor_kernel, K=K, pad=pad,
                               halo_front=halo_front, T_valid=T)

    flops = 2 * B_pad * T_pad * K * Fdim * (Cin + Fdim) + 2 * B_pad * T_pad * Fdim
    bytes_accessed = (B_pad * T_halo * Cin * mm_bytes          # x
                      + 2 * B_pad * T_pad * 4                  # maskl + out
                      + weight_bytes)
    cost = pl.CostEstimate(flops=int(flops),
                           transcendentals=int(2 * B_pad * T_pad),   # rsqrt per LN row
                           bytes_accessed=int(bytes_accessed))

    out = pl.pallas_call(
        kernel,
        out_shape=jax.ShapeDtypeStruct((G, bb, T_pad), jnp.float32),
        grid_spec=pltpu.PrefetchScalarGridSpec(
            num_scalar_prefetch=0,
            grid=(G,),
            in_specs=[
                pl.BlockSpec((bb, T_halo, Cin), lambda g: (g, 0, 0)),
                pl.BlockSpec((1, bb, T_pad), lambda g: (g, 0, 0)),
            ] + [full_spec(w.shape) for w in weights],
            out_specs=pl.BlockSpec((1, bb, T_pad), lambda g: (g, 0, 0)),
            scratch_shapes=[
                pltpu.VMEM((bb, halo_front + T_pad + pad, Fdim), matmul_dtype),
            ],
        ),
        compiler_params=pltpu.CompilerParams(
            dimension_semantics=("parallel",),
            vmem_limit_bytes=int(vmem_limit)),
        cost_estimate=cost,
    )(x, mask_lane, *weights)

    return out.reshape(B_pad, T_pad)[:B, :T]


def reference(enc_out, mask, params):
    """Pure-JAX f32 reference mirroring the PyTorch forward (eval mode)."""
    w1, cb1, g1, be1, w2, cb2, g2, be2, fcw, fcb = params
    x = enc_out * mask

    def layer(x, w, cb, g, be):
        K = w.shape[0]
        pad = K // 2
        T = x.shape[1]
        xp = jnp.pad(x, ((0, 0), (pad, pad), (0, 0)))
        y = sum(jnp.einsum('btc,cf->btf', xp[:, k:k + T, :], w[k]) for k in range(K)) + cb
        y = jnp.maximum(y, 0.0)
        m = y.mean(-1, keepdims=True)
        v = ((y - m) ** 2).mean(-1, keepdims=True)
        return (y - m) / jnp.sqrt(v + LN_EPS) * g + be

    h = layer(x, w1, cb1, g1, be1)
    h = layer(h, w2, cb2, g2, be2)
    o = h @ fcw + fcb
    o = o * mask
    return o[..., 0]


def make_params(key, input_size, filter_size, kernel_size):
    ks = jax.random.split(key, 6)
    # Conv weights stored as (K, Cin, Cout)  (torch Conv1d weight is (Cout, Cin, K)).
    w1 = 0.1 * jax.random.normal(ks[0], (kernel_size, input_size, filter_size), jnp.float32)
    cb1 = 0.1 * jax.random.normal(ks[1], (1, filter_size), jnp.float32)
    g1 = jnp.ones((1, filter_size), jnp.float32)
    be1 = jnp.zeros((1, filter_size), jnp.float32)
    w2 = 0.1 * jax.random.normal(ks[2], (kernel_size, filter_size, filter_size), jnp.float32)
    cb2 = 0.1 * jax.random.normal(ks[3], (1, filter_size), jnp.float32)
    g2 = jnp.ones((1, filter_size), jnp.float32)
    be2 = jnp.zeros((1, filter_size), jnp.float32)
    fcw = 0.1 * jax.random.normal(ks[4], (filter_size, 1), jnp.float32)
    fcb = 0.1 * jax.random.normal(ks[5], (1, 1), jnp.float32)
    return (w1, cb1, g1, be1, w2, cb2, g2, be2, fcw, fcb)


if __name__ == "__main__":
    key = jax.random.PRNGKey(0)
    k_x, k_p, k_x2, k_p2 = jax.random.split(key, 4)

    # ---- Test 1: aligned shapes (T % 8 == 0): exact f32 path + bf16 path.
    B, T = 4, 16
    input_size, filter_size, kernel_size = 32, 32, 3
    enc_out = jax.random.normal(k_x, (B, T, input_size), jnp.float32)
    lengths = jnp.array([16, 10, 13, 7], jnp.int32)
    mask = (jnp.arange(T)[None, :] < lengths[:, None]).astype(jnp.float32)[..., None]
    params = make_params(k_p, input_size, filter_size, kernel_size)
    ref = reference(enc_out, mask, params)

    out_f32 = jax.block_until_ready(
        temporal_predictor(enc_out, mask, params, matmul_dtype=jnp.float32))
    assert out_f32.shape == (B, T)
    assert jnp.allclose(out_f32, ref, rtol=1e-4, atol=1e-4), (
        f"f32 max abs err {jnp.max(jnp.abs(out_f32 - ref))}")

    out_bf16 = jax.block_until_ready(temporal_predictor(enc_out, mask, params))
    assert out_bf16.shape == (B, T)
    assert jnp.allclose(out_bf16, ref, rtol=5e-2, atol=5e-2), (
        f"bf16 max abs err {jnp.max(jnp.abs(out_bf16 - ref))}")

    # ---- Test 2: unaligned T (exercises the padded-time-row fix for layer 2),
    # odd B (batch padding) and a wider kernel (pad=2).
    B2, T2, ks2 = 3, 13, 5
    enc_out2 = jax.random.normal(k_x2, (B2, T2, input_size), jnp.float32)
    lengths2 = jnp.array([13, 9, 5], jnp.int32)
    mask2 = (jnp.arange(T2)[None, :] < lengths2[:, None]).astype(jnp.float32)[..., None]
    params2 = make_params(k_p2, input_size, filter_size, ks2)
    ref2 = reference(enc_out2, mask2, params2)

    out2 = jax.block_until_ready(
        temporal_predictor(enc_out2, mask2, params2, matmul_dtype=jnp.float32))
    assert out2.shape == (B2, T2)
    assert jnp.allclose(out2, ref2, rtol=1e-4, atol=1e-4), (
        f"unaligned-T f32 max abs err {jnp.max(jnp.abs(out2 - ref2))}")

    print("KERNEL_OK")
</pallas_src>

<mosaic_0001>
module attributes {stable_mosaic.version = 11 : i64} {
  func.func @temporal_predictor_kernel(%arg0: i32, %arg1: memref<4x18x32xf32, #tpu.memory_space<vmem>>, %arg2: memref<1x4x16xf32, #tpu.memory_space<vmem>>, %arg3: memref<3x32x32xf32, #tpu.memory_space<vmem>>, %arg4: memref<1x32xf32, #tpu.memory_space<vmem>>, %arg5: memref<1x32xf32, #tpu.memory_space<vmem>>, %arg6: memref<1x32xf32, #tpu.memory_space<vmem>>, %arg7: memref<3x32x32xf32, #tpu.memory_space<vmem>>, %arg8: memref<1x32xf32, #tpu.memory_space<vmem>>, %arg9: memref<1x32xf32, #tpu.memory_space<vmem>>, %arg10: memref<1x32xf32, #tpu.memory_space<vmem>>, %arg11: memref<1x32xf32, #tpu.memory_space<vmem>>, %arg12: memref<1x1xf32, #tpu.memory_space<vmem>>, %arg13: memref<1x4x16xf32, #tpu.memory_space<vmem>>, %arg14: memref<4x25x32xf32, #tpu.memory_space<vmem>>) attributes {dimension_semantics = [#tpu.dimension_semantics<parallel>], iteration_bounds = array<i64: 1>, scalar_prefetch = 0 : i64, scratch_operands = 1 : i64, tpu.core_type = #tpu.core_type<tc>, window_params = [{transform_indices = @transform_0, window_bounds = array<i64: 4, 18, 32>}, {transform_indices = @transform_1, window_bounds = array<i64: 1, 4, 16>}, {pipeline_mode = #tpu.pipeline_mode<synchronous>, transform_indices = @transform_2, window_bounds = array<i64: 3, 32, 32>}, {pipeline_mode = #tpu.pipeline_mode<synchronous>, transform_indices = @transform_3, window_bounds = array<i64: 1, 32>}, {pipeline_mode = #tpu.pipeline_mode<synchronous>, transform_indices = @transform_4, window_bounds = array<i64: 1, 32>}, {pipeline_mode = #tpu.pipeline_mode<synchronous>, transform_indices = @transform_5, window_bounds = array<i64: 1, 32>}, {pipeline_mode = #tpu.pipeline_mode<synchronous>, transform_indices = @transform_6, window_bounds = array<i64: 3, 32, 32>}, {pipeline_mode = #tpu.pipeline_mode<synchronous>, transform_indices = @transform_7, window_bounds = array<i64: 1, 32>}, {pipeline_mode = #tpu.pipeline_mode<synchronous>, transform_indices = @transform_8, window_bounds = array<i64: 1, 32>}, {pipeline_mode = #tpu.pipeline_mode<synchronous>, transform_indices = @transform_9, window_bounds = array<i64: 1, 32>}, {pipeline_mode = #tpu.pipeline_mode<synchronous>, transform_indices = @transform_10, window_bounds = array<i64: 1, 32>}, {pipeline_mode = #tpu.pipeline_mode<synchronous>, transform_indices = @transform_11, window_bounds = array<i64: 1, 1>}, {transform_indices = @transform_12, window_bounds = array<i64: 1, 4, 16>}]} {
    %c0 = arith.constant 0 : index
    %c0_0 = arith.constant 0 : index
    %c0_1 = arith.constant 0 : index
    %0 = vector.load %arg1[%c0, %c0_0, %c0_1] : memref<4x18x32xf32, #tpu.memory_space<vmem>>, vector<4x16x32xf32>
    %1 = vector.shape_cast %0 : vector<4x16x32xf32> to vector<64x32xf32>
    %c0_2 = arith.constant 0 : index
    %c0_3 = arith.constant 0 : index
    %c0_4 = arith.constant 0 : index
    %2 = vector.load %arg3[%c0_2, %c0_3, %c0_4] : memref<3x32x32xf32, #tpu.memory_space<vmem>>, vector<1x32x32xf32>
    %3 = vector.shape_cast %2 : vector<1x32x32xf32> to vector<32x32xf32>
    %cst = arith.constant dense<0.000000e+00> : vector<64x32xf32>
    %4 = tpu.matmul %1, %3, %cst {dimension_numbers = #tpu.dot_dimension_numbers<[1], [0], [0], [1], [0, 0, 1, 1], [], []>} : vector<64x32xf32>, vector<32x32xf32>, vector<64x32xf32> -> vector<64x32xf32>
    %c0_5 = arith.constant 0 : index
    %c1 = arith.constant 1 : index
    %c0_6 = arith.constant 0 : index
    %5 = vector.load %arg1[%c0_5, %c1, %c0_6] : memref<4x18x32xf32, #tpu.memory_space<vmem>>, vector<4x16x32xf32>
    %6 = vector.shape_cast %5 : vector<4x16x32xf32> to vector<64x32xf32>
    %c1_7 = arith.constant 1 : index
    %c0_8 = arith.constant 0 : index
    %c0_9 = arith.constant 0 : index
    %7 = vector.load %arg3[%c1_7, %c0_8, %c0_9] : memref<3x32x32xf32, #tpu.memory_space<vmem>>, vector<1x32x32xf32>
    %8 = vector.shape_cast %7 : vector<1x32x32xf32> to vector<32x32xf32>
    %cst_10 = arith.constant dense<0.000000e+00> : vector<64x32xf32>
    %9 = tpu.matmul %6, %8, %cst_10 {dimension_numbers = #tpu.dot_dimension_numbers<[1], [0], [0], [1], [0, 0, 1, 1], [], []>} : vector<64x32xf32>, vector<32x32xf32>, vector<64x32xf32> -> vector<64x32xf32>
    %10 = arith.addf %4, %9 : vector<64x32xf32>
    %c0_11 = arith.constant 0 : index
    %c2 = arith.constant 2 : index
    %c0_12 = arith.constant 0 : index
    %11 = vector.load %arg1[%c0_11, %c2, %c0_12] : memref<4x18x32xf32, #tpu.memory_space<vmem>>, vector<4x16x32xf32>
    %12 = vector.shape_cast %11 : vector<4x16x32xf32> to vector<64x32xf32>
    %c2_13 = arith.constant 2 : index
    %c0_14 = arith.constant 0 : index
    %c0_15 = arith.constant 0 : index
    %13 = vector.load %arg3[%c2_13, %c0_14, %c0_15] : memref<3x32x32xf32, #tpu.memory_space<vmem>>, vector<1x32x32xf32>
    %14 = vector.shape_cast %13 : vector<1x32x32xf32> to vector<32x32xf32>
    %cst_16 = arith.constant dense<0.000000e+00> : vector<64x32xf32>
    %15 = tpu.matmul %12, %14, %cst_16 {dimension_numbers = #tpu.dot_dimension_numbers<[1], [0], [0], [1], [0, 0, 1, 1], [], []>} : vector<64x32xf32>, vector<32x32xf32>, vector<64x32xf32> -> vector<64x32xf32>
    %16 = arith.addf %10, %15 : vector<64x32xf32>
    %c0_17 = arith.constant 0 : index
    %c0_18 = arith.constant 0 : index
    %17 = vector.load %arg4[%c0_17, %c0_18] : memref<1x32xf32, #tpu.memory_space<vmem>>, vector<1x32xf32>
    %18 = vector.broadcast %17 : vector<1x32xf32> to vector<64x32xf32>
    %19 = arith.addf %16, %18 : vector<64x32xf32>
    %cst_19 = arith.constant 0.000000e+00 : f32
    %20 = vector.broadcast %cst_19 : f32 to vector<64x32xf32>
    %21 = arith.maximumf %19, %20 : vector<64x32xf32>
    %cst_20 = arith.constant dense<0.000000e+00> : vector<64xf32>
    %22 = vector.multi_reduction <add>, %21, %cst_20 [1] : vector<64x32xf32> to vector<64xf32>
    %23 = vector.shape_cast %22 : vector<64xf32> to vector<64x1xf32>
    %24 = arith.mulf %21, %21 : vector<64x32xf32>
    %cst_21 = arith.constant dense<0.000000e+00> : vector<64xf32>
    %25 = vector.multi_reduction <add>, %24, %cst_21 [1] : vector<64x32xf32> to vector<64xf32>
    %26 = vector.shape_cast %25 : vector<64xf32> to vector<64x1xf32>
    %cst_22 = arith.constant 3.125000e-02 : f32
    %27 = vector.broadcast %cst_22 : f32 to vector<64x1xf32>
    %28 = arith.mulf %23, %27 : vector<64x1xf32>
    %cst_23 = arith.constant 3.125000e-02 : f32
    %29 = vector.broadcast %cst_23 : f32 to vector<64x1xf32>
    %30 = arith.mulf %26, %29 : vector<64x1xf32>
    %31 = arith.mulf %28, %28 : vector<64x1xf32>
    %32 = arith.subf %30, %31 : vector<64x1xf32>
    %cst_24 = arith.constant 0.000000e+00 : f32
    %33 = vector.broadcast %cst_24 : f32 to vector<64x1xf32>
    %34 = arith.maximumf %32, %33 : vector<64x1xf32>
    %35 = vector.broadcast %28 : vector<64x1xf32> to vector<64x32xf32>
    %36 = arith.subf %21, %35 : vector<64x32xf32>
    %cst_25 = arith.constant 9.99999974E-6 : f32
    %37 = vector.broadcast %cst_25 : f32 to vector<64x1xf32>
    %38 = arith.addf %34, %37 : vector<64x1xf32>
    %39 = math.rsqrt %38 : vector<64x1xf32>
    %40 = vector.broadcast %39 : vector<64x1xf32> to vector<64x32xf32>
    %41 = arith.mulf %36, %40 : vector<64x32xf32>
    %c0_26 = arith.constant 0 : index
    %c0_27 = arith.constant 0 : index
    %42 = vector.load %arg5[%c0_26, %c0_27] : memref<1x32xf32, #tpu.memory_space<vmem>>, vector<1x32xf32>
    %43 = vector.broadcast %42 : vector<1x32xf32> to vector<64x32xf32>
    %44 = arith.mulf %41, %43 : vector<64x32xf32>
    %c0_28 = arith.constant 0 : index
    %c0_29 = arith.constant 0 : index
    %45 = vector.load %arg6[%c0_28, %c0_29] : memref<1x32xf32, #tpu.memory_space<vmem>>, vector<1x32xf32>
    %46 = vector.broadcast %45 : vector<1x32xf32> to vector<64x32xf32>
    %47 = arith.addf %44, %46 : vector<64x32xf32>
    %48 = vector.shape_cast %47 : vector<64x32xf32> to vector<4x16x32xf32>
    %cst_30 = arith.constant 0.000000e+00 : f32
    %49 = vector.broadcast %cst_30 : f32 to vector<4x8x32xf32>
    %c0_31 = arith.constant 0 : index
    %c0_32 = arith.constant 0 : index
    %c0_33 = arith.constant 0 : index
    %50 = vector.load %arg14[%c0_31, %c0_32, %c0_33] : memref<4x25x32xf32, #tpu.memory_space<vmem>>, vector<4x8x32xf32>
    tpu.vector_store %arg14[%c0_31, %c0_32, %c0_33], %49 {strides = array<i32>} : memref<4x25x32xf32, #tpu.memory_space<vmem>>, vector<4x8x32xf32>,
    %cst_34 = arith.constant 0.000000e+00 : f32
    %51 = vector.broadcast %cst_34 : f32 to vector<4x1x32xf32>
    %c0_35 = arith.constant 0 : index
    %c24 = arith.constant 24 : index
    %c0_36 = arith.constant 0 : index
    %52 = vector.load %arg14[%c0_35, %c24, %c0_36] : memref<4x25x32xf32, #tpu.memory_space<vmem>>, vector<4x1x32xf32>
    tpu.vector_store %arg14[%c0_35, %c24, %c0_36], %51 {strides = array<i32>} : memref<4x25x32xf32, #tpu.memory_space<vmem>>, vector<4x1x32xf32>,
    %c0_37 = arith.constant 0 : index
    %c8 = arith.constant 8 : index
    %c0_38 = arith.constant 0 : index
    %53 = vector.load %arg14[%c0_37, %c8, %c0_38] : memref<4x25x32xf32, #tpu.memory_space<vmem>>, vector<4x16x32xf32>
    tpu.vector_store %arg14[%c0_37, %c8, %c0_38], %48 {strides = array<i32>} : memref<4x25x32xf32, #tpu.memory_space<vmem>>, vector<4x16x32xf32>,
    %c0_39 = arith.constant 0 : index
    %c7 = arith.constant 7 : index
    %c0_40 = arith.constant 0 : index
    %54 = vector.load %arg14[%c0_39, %c7, %c0_40] : memref<4x25x32xf32, #tpu.memory_space<vmem>>, vector<4x16x32xf32>
    %55 = vector.shape_cast %54 : vector<4x16x32xf32> to vector<64x32xf32>
    %c0_41 = arith.constant 0 : index
    %c0_42 = arith.constant 0 : index
    %c0_43 = arith.constant 0 : index
    %56 = vector.load %arg7[%c0_41, %c0_42, %c0_43] : memref<3x32x32xf32, #tpu.memory_space<vmem>>, vector<1x32x32xf32>
    %57 = vector.shape_cast %56 : vector<1x32x32xf32> to vector<32x32xf32>
    %cst_44 = arith.constant dense<0.000000e+00> : vector<64x32xf32>
    %58 = tpu.matmul %55, %57, %cst_44 {dimension_numbers = #tpu.dot_dimension_numbers<[1], [0], [0], [1], [0, 0, 1, 1], [], []>} : vector<64x32xf32>, vector<32x32xf32>, vector<64x32xf32> -> vector<64x32xf32>
    %c0_45 = arith.constant 0 : index
    %c8_46 = arith.constant 8 : index
    %c0_47 = arith.constant 0 : index
    %59 = vector.load %arg14[%c0_45, %c8_46, %c0_47] : memref<4x25x32xf32, #tpu.memory_space<vmem>>, vector<4x16x32xf32>
    %60 = vector.shape_cast %59 : vector<4x16x32xf32> to vector<64x32xf32>
    %c1_48 = arith.constant 1 : index
    %c0_49 = arith.constant 0 : index
    %c0_50 = arith.constant 0 : index
    %61 = vector.load %arg7[%c1_48, %c0_49, %c0_50] : memref<3x32x32xf32, #tpu.memory_space<vmem>>, vector<1x32x32xf32>
    %62 = vector.shape_cast %61 : vector<1x32x32xf32> to vector<32x32xf32>
    %cst_51 = arith.constant dense<0.000000e+00> : vector<64x32xf32>
    %63 = tpu.matmul %60, %62, %cst_51 {dimension_numbers = #tpu.dot_dimension_numbers<[1], [0], [0], [1], [0, 0, 1, 1], [], []>} : vector<64x32xf32>, vector<32x32xf32>, vector<64x32xf32> -> vector<64x32xf32>
    %64 = arith.addf %58, %63 : vector<64x32xf32>
    %c0_52 = arith.constant 0 : index
    %c9 = arith.constant 9 : index
    %c0_53 = arith.constant 0 : index
    %65 = vector.load %arg14[%c0_52, %c9, %c0_53] : memref<4x25x32xf32, #tpu.memory_space<vmem>>, vector<4x16x32xf32>
    %66 = vector.shape_cast %65 : vector<4x16x32xf32> to vector<64x32xf32>
    %c2_54 = arith.constant 2 : index
    %c0_55 = arith.constant 0 : index
    %c0_56 = arith.constant 0 : index
    %67 = vector.load %arg7[%c2_54, %c0_55, %c0_56] : memref<3x32x32xf32, #tpu.memory_space<vmem>>, vector<1x32x32xf32>
    %68 = vector.shape_cast %67 : vector<1x32x32xf32> to vector<32x32xf32>
    %cst_57 = arith.constant dense<0.000000e+00> : vector<64x32xf32>
    %69 = tpu.matmul %66, %68, %cst_57 {dimension_numbers = #tpu.dot_dimension_numbers<[1], [0], [0], [1], [0, 0, 1, 1], [], []>} : vector<64x32xf32>, vector<32x32xf32>, vector<64x32xf32> -> vector<64x32xf32>
    %70 = arith.addf %64, %69 : vector<64x32xf32>
    %c0_58 = arith.constant 0 : index
    %c0_59 = arith.constant 0 : index
    %71 = vector.load %arg8[%c0_58, %c0_59] : memref<1x32xf32, #tpu.memory_space<vmem>>, vector<1x32xf32>
    %72 = vector.broadcast %71 : vector<1x32xf32> to vector<64x32xf32>
    %73 = arith.addf %70, %72 : vector<64x32xf32>
    %cst_60 = arith.constant 0.000000e+00 : f32
    %74 = vector.broadcast %cst_60 : f32 to vector<64x32xf32>
    %75 = arith.maximumf %73, %74 : vector<64x32xf32>
    %cst_61 = arith.constant dense<0.000000e+00> : vector<64xf32>
    %76 = vector.multi_reduction <add>, %75, %cst_61 [1] : vector<64x32xf32> to vector<64xf32>
    %77 = vector.shape_cast %76 : vector<64xf32> to vector<64x1xf32>
    %78 = arith.mulf %75, %75 : vector<64x32xf32>
    %cst_62 = arith.constant dense<0.000000e+00> : vector<64xf32>
    %79 = vector.multi_reduction <add>, %78, %cst_62 [1] : vector<64x32xf32> to vector<64xf32>
    %80 = vector.shape_cast %79 : vector<64xf32> to vector<64x1xf32>
    %cst_63 = arith.constant 3.125000e-02 : f32
    %81 = vector.broadcast %cst_63 : f32 to vector<64x1xf32>
    %82 = arith.mulf %77, %81 : vector<64x1xf32>
    %cst_64 = arith.constant 3.125000e-02 : f32
    %83 = vector.broadcast %cst_64 : f32 to vector<64x1xf32>
    %84 = arith.mulf %80, %83 : vector<64x1xf32>
    %85 = arith.mulf %82, %82 : vector<64x1xf32>
    %86 = arith.subf %84, %85 : vector<64x1xf32>
    %cst_65 = arith.constant 0.000000e+00 : f32
    %87 = vector.broadcast %cst_65 : f32 to vector<64x1xf32>
    %88 = arith.maximumf %86, %87 : vector<64x1xf32>
    %89 = vector.broadcast %82 : vector<64x1xf32> to vector<64x32xf32>
    %90 = arith.subf %75, %89 : vector<64x32xf32>
    %cst_66 = arith.constant 9.99999974E-6 : f32
    %91 = vector.broadcast %cst_66 : f32 to vector<64x1xf32>
    %92 = arith.addf %88, %91 : vector<64x1xf32>
    %93 = math.rsqrt %92 : vector<64x1xf32>
    %94 = vector.broadcast %93 : vector<64x1xf32> to vector<64x32xf32>
    %95 = arith.mulf %90, %94 : vector<64x32xf32>
    %c0_67 = arith.constant 0 : index
    %c0_68 = arith.constant 0 : index
    %96 = vector.load %arg9[%c0_67, %c0_68] : memref<1x32xf32, #tpu.memory_space<vmem>>, vector<1x32xf32>
    %97 = vector.broadcast %96 : vector<1x32xf32> to vector<64x32xf32>
    %98 = arith.mulf %95, %97 : vector<64x32xf32>
    %c0_69 = arith.constant 0 : index
    %c0_70 = arith.constant 0 : index
    %99 = vector.load %arg10[%c0_69, %c0_70] : memref<1x32xf32, #tpu.memory_space<vmem>>, vector<1x32xf32>
    %100 = vector.broadcast %99 : vector<1x32xf32> to vector<64x32xf32>
    %101 = arith.addf %98, %100 : vector<64x32xf32>
    %102 = vector.shape_cast %101 : vector<64x32xf32> to vector<4x16x32xf32>
    %c0_71 = arith.constant 0 : index
    %c0_72 = arith.constant 0 : index
    %103 = vector.load %arg11[%c0_71, %c0_72] : memref<1x32xf32, #tpu.memory_space<vmem>>, vector<1x32xf32>
    %104 = vector.shape_cast %103 : vector<1x32xf32> to vector<1x1x32xf32>
    %105 = vector.broadcast %104 : vector<1x1x32xf32> to vector<4x16x32xf32>
    %106 = arith.mulf %102, %105 : vector<4x16x32xf32>
    %cst_73 = arith.constant dense<0.000000e+00> : vector<4x16xf32>
    %107 = vector.multi_reduction <add>, %106, %cst_73 [2] : vector<4x16x32xf32> to vector<4x16xf32>
    %c0_74 = arith.constant 0 : index
    %c0_75 = arith.constant 0 : index
    %108 = vector.load %arg12[%c0_74, %c0_75] : memref<1x1xf32, #tpu.memory_space<vmem>>, vector<1x1xf32>
    %109 = vector.broadcast %108 : vector<1x1xf32> to vector<4x16xf32>
    %110 = arith.addf %107, %109 : vector<4x16xf32>
    %c0_76 = arith.constant 0 : index
    %c0_77 = arith.constant 0 : index
    %c0_78 = arith.constant 0 : index
    %111 = vector.load %arg2[%c0_76, %c0_77, %c0_78] : memref<1x4x16xf32, #tpu.memory_space<vmem>>, vector<1x4x16xf32>
    %112 = vector.shape_cast %111 : vector<1x4x16xf32> to vector<4x16xf32>
    %113 = arith.mulf %110, %112 : vector<4x16xf32>
    %c0_79 = arith.constant 0 : index
    %c0_80 = arith.constant 0 : index
    %c0_81 = arith.constant 0 : index
    %114 = vector.load %arg13[%c0_79, %c0_80, %c0_81] : memref<1x4x16xf32, #tpu.memory_space<vmem>>, vector<1x4x16xf32>
    %115 = vector.shape_cast %114 : vector<1x4x16xf32> to vector<4x16xf32>
    %116 = vector.shape_cast %113 : vector<4x16xf32> to vector<1x4x16xf32>
    tpu.vector_store %arg13[%c0_79, %c0_80, %c0_81], %116 {strides = array<i32>} : memref<1x4x16xf32, #tpu.memory_space<vmem>>, vector<1x4x16xf32>,
    return
  }
  func.func @transform_0(%arg0: i32) -> (i32, i32, i32) {
    %c0_i32 = arith.constant 0 : i32
    %c0_i32_0 = arith.constant 0 : i32
    %c0_i32_1 = arith.constant 0 : i32
    return %arg0, %c0_i32, %c0_i32_0 : i32, i32, i32
  }
  func.func @transform_1(%arg0: i32) -> (i32, i32, i32) {
    %c0_i32 = arith.constant 0 : i32
    %c0_i32_0 = arith.constant 0 : i32
    %c0_i32_1 = arith.constant 0 : i32
    return %arg0, %c0_i32, %c0_i32_0 : i32, i32, i32
  }
  func.func @transform_2(%arg0: i32) -> (i32, i32, i32) {
    %c0_i32 = arith.constant 0 : i32
    %c0_i32_0 = arith.constant 0 : i32
    %c0_i32_1 = arith.constant 0 : i32
    %c0_i32_2 = arith.constant 0 : i32
    return %c0_i32, %c0_i32_0, %c0_i32_1 : i32, i32, i32
  }
  func.func @transform_3(%arg0: i32) -> (i32, i32) {
    %c0_i32 = arith.constant 0 : i32
    %c0_i32_0 = arith.constant 0 : i32
    %c0_i32_1 = arith.constant 0 : i32
    return %c0_i32, %c0_i32_0 : i32, i32
  }
  func.func @transform_4(%arg0: i32) -> (i32, i32) {
    %c0_i32 = arith.constant 0 : i32
    %c0_i32_0 = arith.constant 0 : i32
    %c0_i32_1 = arith.constant 0 : i32
    return %c0_i32, %c0_i32_0 : i32, i32
  }
  func.func @transform_5(%arg0: i32) -> (i32, i32) {
    %c0_i32 = arith.constant 0 : i32
    %c0_i32_0 = arith.constant 0 : i32
    %c0_i32_1 = arith.constant 0 : i32
    return %c0_i32, %c0_i32_0 : i32, i32
  }
  func.func @transform_6(%arg0: i32) -> (i32, i32, i32) {
    %c0_i32 = arith.constant 0 : i32
    %c0_i32_0 = arith.constant 0 : i32
    %c0_i32_1 = arith.constant 0 : i32
    %c0_i32_2 = arith.constant 0 : i32
    return %c0_i32, %c0_i32_0, %c0_i32_1 : i32, i32, i32
  }
  func.func @transform_7(%arg0: i32) -> (i32, i32) {
    %c0_i32 = arith.constant 0 : i32
    %c0_i32_0 = arith.constant 0 : i32
    %c0_i32_1 = arith.constant 0 : i32
    return %c0_i32, %c0_i32_0 : i32, i32
  }
  func.func @transform_8(%arg0: i32) -> (i32, i32) {
    %c0_i32 = arith.constant 0 : i32
    %c0_i32_0 = arith.constant 0 : i32
    %c0_i32_1 = arith.constant 0 : i32
    return %c0_i32, %c0_i32_0 : i32, i32
  }
  func.func @transform_9(%arg0: i32) -> (i32, i32) {
    %c0_i32 = arith.constant 0 : i32
    %c0_i32_0 = arith.constant 0 : i32
    %c0_i32_1 = arith.constant 0 : i32
    return %c0_i32, %c0_i32_0 : i32, i32
  }
  func.func @transform_10(%arg0: i32) -> (i32, i32) {
    %c0_i32 = arith.constant 0 : i32
    %c0_i32_0 = arith.constant 0 : i32
    %c0_i32_1 = arith.constant 0 : i32
    return %c0_i32, %c0_i32_0 : i32, i32
  }
  func.func @transform_11(%arg0: i32) -> (i32, i32) {
    %c0_i32 = arith.constant 0 : i32
    %c0_i32_0 = arith.constant 0 : i32
    %c0_i32_1 = arith.constant 0 : i32
    return %c0_i32, %c0_i32_0 : i32, i32
  }
  func.func @transform_12(%arg0: i32) -> (i32, i32, i32) {
    %c0_i32 = arith.constant 0 : i32
    %c0_i32_0 = arith.constant 0 : i32
    %c0_i32_1 = arith.constant 0 : i32
    return %arg0, %c0_i32, %c0_i32_0 : i32, i32, i32
  }
}

</mosaic_0001>

<llo_original>
// kernel: tpu_custom_call.1
$region0: #{tpu_custom_call.1}
  #allocation0 [shape = 'u32[]', space=smem, size = 0x4, offset = 0x4, fixed_abs, tag = 'smem constant byte address 0x4 - core index']
  #allocation1 [shape = 'u32[72,128]{1,0:T(1,128)}', space=vmem, size = 0x9000, scoped, tag = 'internal scratch']
  #allocation2 [shape = 'f32[4,25,32]{2,1,0:T(8,128)}', space=vmem, size = 0x10000, scoped, tag = 'scratch operand']
  #allocation3 [shape = 'f32[1,1]{1,0:T(1,128)S(1)}', space=vmem, size = 0x200, scoped, tag = 'scoped memory for tpu_custom_call.1']
  %s0 = inlined_call_operand.vmem [shape: f32[4,18,32], index: 0, kind: input, shape index: {}]
  %s1 = inlined_call_operand.vmem [shape: f32[1,4,16], index: 1, kind: input, shape index: {}]
  %s2 = inlined_call_operand.vmem [shape: f32[3,32,32], index: 2, kind: input, shape index: {}]
  %s3 = inlined_call_operand.vmem [shape: f32[1,32], index: 3, kind: input, shape index: {}]
  %s4 = inlined_call_operand.vmem [shape: f32[1,32], index: 4, kind: input, shape index: {}]
  %s5 = inlined_call_operand.vmem [shape: f32[1,32], index: 5, kind: input, shape index: {}]
  %s6 = inlined_call_operand.hbm [shape: f32[3,32,32], index: 6, kind: input, shape index: {}]
  %s7 = inlined_call_operand.vmem [shape: f32[1,32], index: 7, kind: input, shape index: {}]
  %s8 = inlined_call_operand.vmem [shape: f32[1,32], index: 8, kind: input, shape index: {}]
  %s9 = inlined_call_operand.vmem [shape: f32[1,32], index: 9, kind: input, shape index: {}]
  %s10 = inlined_call_operand.vmem [shape: f32[1,32], index: 10, kind: input, shape index: {}]
  %s11 = inlined_call_operand.<no memory space> [shape: f32[1,1], index: 11, kind: input, shape index: {}]
  %s12 = inlined_call_operand.hbm [shape: f32[1,4,16], index: 12, kind: output, shape index: {}]
  %s13 = sld [smem:[#allocation0]]
  $region62: #{tpu_custom_call.1} parent=0
    _
  %s15 = ssub.s32 1, %s13
  %s16 = scalar_select 0, %s15, %s13
  %v17 = vstv %s11
  %18 = vst [vmem:[#allocation3] sm:$0x1] %v17
  $region1: #{tpu_custom_call.1} parent=0
    #allocation4 [shape = 'u8[49152]{0}', space=vmem, size = 0xc000, scoped, tag = 'input window, operand 6, single buffered']
    #allocation5 [shape = 's32[1]{0}', space=sflag, size = 0x4, scoped, tag = 'scoped memory for tpu_custom_call.1']
    #allocation6 [shape = 's32[1]{0}', space=sflag, size = 0x4, scoped, tag = 'scoped memory for tpu_custom_call.1']
    #allocation7 [shape = 'u8[2048]{0}', space=vmem, size = 0x800, scoped, tag = 'output window, operand 0, single buffered']
    %19 = vsyncpa [#allocation5], 0
    %20 = vsyncpa [#allocation6], 0
    // Predicated region
    $region2: #{tpu_custom_call.1} parent=1 // pred_check
      _
    $region3: #{tpu_custom_call.1} parent=1 // pred_check_branch
      %22 = sbr.rel (0) target = $region5
    $region4: #{tpu_custom_call.1} parent=1 // pred_region
      _
    $region5: #{tpu_custom_call.1} parent=1 // pred_fallthru
      _
    // Predicated region
    $region6: #{tpu_custom_call.1} parent=1 // pred_check
      _
    $region7: #{tpu_custom_call.1} parent=1 // pred_check_branch
      %24 = sbr.rel (0) target = $region9
    $region8: #{tpu_custom_call.1} parent=1 // pred_region
      _
    $region9: #{tpu_custom_call.1} parent=1 // pred_fallthru
      _
    // Predicated region
    $region10: #{tpu_custom_call.1} parent=1 // pred_check
      _
    $region11: #{tpu_custom_call.1} parent=1 // pred_check_branch
      %26 = sbr.rel (0) target = $region13
    $region12: #{tpu_custom_call.1} parent=1 // pred_region
      _
    $region13: #{tpu_custom_call.1} parent=1 // pred_fallthru
      _
    // Predicated region
    $region14: #{tpu_custom_call.1} parent=1 // pred_check
      _
    $region15: #{tpu_custom_call.1} parent=1 // pred_check_branch
      %28 = sbr.rel (0) target = $region17
    $region16: #{tpu_custom_call.1} parent=1 // pred_region
      _
    $region17: #{tpu_custom_call.1} parent=1 // pred_fallthru
      _
    // Predicated region
    $region18: #{tpu_custom_call.1} parent=1 // pred_check
      _
    $region19: #{tpu_custom_call.1} parent=1 // pred_check_branch
      %30 = sbr.rel (0) target = $region21
    $region20: #{tpu_custom_call.1} parent=1 // pred_region
      _
    $region21: #{tpu_custom_call.1} parent=1 // pred_fallthru
      _
    // Predicated region
    $region22: #{tpu_custom_call.1} parent=1 // pred_check
      _
    $region23: #{tpu_custom_call.1} parent=1 // pred_check_branch
      %32 = sbr.rel (0) target = $region25
    $region24: #{tpu_custom_call.1} parent=1 // pred_region
      _
    $region25: #{tpu_custom_call.1} parent=1 // pred_fallthru
      _
    // Predicated region
    $region26: #{tpu_custom_call.1} parent=1 // pred_check
      _
    $region27: #{tpu_custom_call.1} parent=1 // pred_check_branch
      %34 = sbr.rel (0) target = $region29
    $region28: #{tpu_custom_call.1} parent=1 // pred_region
      %36 = vsyncadd [#allocation5], 0
      %s37 = sshll.u32 %s6, 4
      %s38 = int_to_ptr.hbm [resolvable:$true] %s37
      %s39 = sshll.u32 [#allocation4], 4
      %s40 = int_to_ptr.vmem [resolvable:$true] %s39
      %45 = dma.hbm_to_vmem [thread:$0]  %s38, 1536, %s40, [#allocation5], 128, 128, 8
    $region29: #{tpu_custom_call.1} parent=1 // pred_fallthru
      _
    // Predicated region
    $region30: #{tpu_custom_call.1} parent=1 // pred_check
      _
    $region31: #{tpu_custom_call.1} parent=1 // pred_check_branch
      %47 = sbr.rel (0) target = $region33
    $region32: #{tpu_custom_call.1} parent=1 // pred_region
      _
    $region33: #{tpu_custom_call.1} parent=1 // pred_fallthru
      _
    // Predicated region
    $region34: #{tpu_custom_call.1} parent=1 // pred_check
      _
    $region35: #{tpu_custom_call.1} parent=1 // pred_check_branch
      %49 = sbr.rel (0) target = $region37
    $region36: #{tpu_custom_call.1} parent=1 // pred_region
      _
    $region37: #{tpu_custom_call.1} parent=1 // pred_fallthru
      _
    // Predicated region
    $region38: #{tpu_custom_call.1} parent=1 // pred_check
      _
    $region39: #{tpu_custom_call.1} parent=1 // pred_check_branch
      %51 = sbr.rel (0) target = $region41
    $region40: #{tpu_custom_call.1} parent=1 // pred_region
      _
    $region41: #{tpu_custom_call.1} parent=1 // pred_fallthru
      _
    // Predicated region
    $region42: #{tpu_custom_call.1} parent=1 // pred_check
      _
    $region43: #{tpu_custom_call.1} parent=1 // pred_check_branch
      %53 = sbr.rel (0) target = $region45
    $region44: #{tpu_custom_call.1} parent=1 // pred_region
      _
    $region45: #{tpu_custom_call.1} parent=1 // pred_fallthru
      _
    // Predicated region
    $region46: #{tpu_custom_call.1} parent=1 // pred_check
      _
    $region47: #{tpu_custom_call.1} parent=1 // pred_check_branch
      %55 = sbr.rel (0) target = $region49
    $region48: #{tpu_custom_call.1} parent=1 // pred_region
      _
    $region49: #{tpu_custom_call.1} parent=1 // pred_fallthru
      _
    // Predicated region
    $region50: #{tpu_custom_call.1} parent=1 // pred_check
      _
    $region51: #{tpu_custom_call.1} parent=1 // pred_check_branch
      %57 = sbr.rel (0) target = $region53
    $region52: #{tpu_custom_call.1} parent=1 // pred_region
      %59 = dma.done [#allocation5], 1536
    $region53: #{tpu_custom_call.1} parent=1 // pred_fallthru
      _
    %v60 = vld [vmem:[%s0] sm:$0xff]
    %v61 = vld [vmem:[%s0 + $0x8] sm:$0xff]
    %v62 = vld [vmem:[%s0 + $0x18] sm:$0xff]
    %v63 = vld [vmem:[%s0 + $0x20] sm:$0xff]
    %v64 = vld [vmem:[%s0 + $0x30] sm:$0xff]
    %v65 = vld [vmem:[%s0 + $0x38] sm:$0xff]
    %v66 = vld [vmem:[%s0 + $0x48] sm:$0xff]
    %v67 = vld [vmem:[%s0 + $0x50] sm:$0xff]
    %v68 = vld [vmem:[%s2] sm:$0xff]
    %v69 = vld [vmem:[%s2 + $0x8] sm:$0xff]
    %v70 = vld [vmem:[%s2 + $0x10] sm:$0xff]
    %v71 = vld [vmem:[%s2 + $0x18] sm:$0xff]
    %v72 = vld [vmem:[%s0 + $0x1] sm:$0xff]
    %v73 = vld [vmem:[%s0 + $0x9] sm:$0xff]
    %v74 = vld [vmem:[%s0 + $0x19] sm:$0xff]
    %v75 = vld [vmem:[%s0 + $0x21] sm:$0xff]
    %v76 = vld [vmem:[%s0 + $0x31] sm:$0xff]
    %v77 = vld [vmem:[%s0 + $0x39] sm:$0xff]
    %v78 = vld [vmem:[%s0 + $0x49] sm:$0xff]
    %v79 = vld [vmem:[%s0 + $0x51] sm:$0xff]
    %s80 = scalar_lea.vmem %s2, 32
    %v81 = vld [vmem:[%s80] sm:$0xff]
    %v82 = vld [vmem:[%s80 + $0x8] sm:$0xff]
    %v83 = vld [vmem:[%s80 + $0x10] sm:$0xff]
    %v84 = vld [vmem:[%s80 + $0x18] sm:$0xff]
    %vm85 = vcmask 261120
    %v87 = vsel %vm85, %v72, 0
    %v90 = vsel %vm85, %v73, 0
    %v93 = vsel %vm85, %v74, 0
    %v96 = vsel %vm85, %v75, 0
    %v99 = vsel %vm85, %v76, 0
    %v102 = vsel %vm85, %v77, 0
    %v105 = vsel %vm85, %v78, 0
    %v108 = vsel %vm85, %v79, 0
    %110 = vmatpush.msra.mxu0 0.0
    %111 = vmatpush.msra.mxu0 0.0
    %112 = vmatpush.msra.mxu0 0.0
    %113 = vmatpush.msra.mxu0 0.0
    %114 = vmatpush.msra.mxu0 0.0
    %115 = vmatpush.msra.mxu0 0.0
    %116 = vmatpush.msra.mxu0 0.0
    %117 = vmatpush.msra.mxu0 0.0
    %118 = vmatpush.msra.mxu0 0.0
    %119 = vmatpush.msra.mxu0 0.0
    %120 = vmatpush.msra.mxu0 0.0
    %121 = vmatpush.msra.mxu0 0.0
    %122 = vmatpush.msra.mxu0 %v84
    %123 = vmatpush.msra.mxu0 %v83
    %124 = vmatpush.msra.mxu0 %v82
    %125 = vmatpush.msra.mxu0 %v81
    %126 = vmatmul.f32.gmra.mxu0 %v87
    %v127 = vpop.f32.mrf.mxu0
    %v128 = vadd.f32 0.0, %v127
    %129 = vmatmul.f32.gmra.mxu0 %v90
    %v130 = vpop.f32.mrf.mxu0
    %v131 = vadd.f32 0.0, %v130
    %132 = vmatmul.f32.gmra.mxu0 %v93
    %v133 = vpop.f32.mrf.mxu0
    %v134 = vadd.f32 0.0, %v133
    %135 = vmatmul.f32.gmra.mxu0 %v96
    %v136 = vpop.f32.mrf.mxu0
    %v137 = vadd.f32 0.0, %v136
    %138 = vmatmul.f32.gmra.mxu0 %v99
    %v139 = vpop.f32.mrf.mxu0
    %v140 = vadd.f32 0.0, %v139
    %141 = vmatmul.f32.gmra.mxu0 %v102
    %v142 = vpop.f32.mrf.mxu0
    %v143 = vadd.f32 0.0, %v142
    %144 = vmatmul.f32.gmra.mxu0 %v105
    %v145 = vpop.f32.mrf.mxu0
    %v146 = vadd.f32 0.0, %v145
    %147 = vmatmul.f32.gmra.mxu0 %v108
    %v148 = vpop.f32.mrf.mxu0
    %v149 = vadd.f32 0.0, %v148
    %150 = vdwg.mxu0
    %v152 = vsel %vm85, %v60, 0
    %v155 = vsel %vm85, %v61, 0
    %v158 = vsel %vm85, %v62, 0
    %v161 = vsel %vm85, %v63, 0
    %v164 = vsel %vm85, %v64, 0
    %v167 = vsel %vm85, %v65, 0
    %v170 = vsel %vm85, %v66, 0
    %v173 = vsel %vm85, %v67, 0
    %175 = vmatpush.msra.mxu0 0.0
    %176 = vmatpush.msra.mxu0 0.0
    %177 = vmatpush.msra.mxu0 0.0
    %178 = vmatpush.msra.mxu0 0.0
    %179 = vmatpush.msra.mxu0 0.0
    %180 = vmatpush.msra.mxu0 0.0
    %181 = vmatpush.msra.mxu0 0.0
    %182 = vmatpush.msra.mxu0 0.0
    %183 = vmatpush.msra.mxu0 0.0
    %184 = vmatpush.msra.mxu0 0.0
    %185 = vmatpush.msra.mxu0 0.0
    %186 = vmatpush.msra.mxu0 0.0
    %187 = vmatpush.msra.mxu0 %v71
    %188 = vmatpush.msra.mxu0 %v70
    %189 = vmatpush.msra.mxu0 %v69
    %190 = vmatpush.msra.mxu0 %v68
    %191 = vmatmul.f32.gmra.mxu0 %v152
    %v192 = vpop.f32.mrf.mxu0
    %v193 = vadd.f32 %v128, %v192
    %194 = vmatmul.f32.gmra.mxu0 %v155
    %v195 = vpop.f32.mrf.mxu0
    %v196 = vadd.f32 %v131, %v195
    %197 = vmatmul.f32.gmra.mxu0 %v158
    %v198 = vpop.f32.mrf.mxu0
    %v199 = vadd.f32 %v134, %v198
    %200 = vmatmul.f32.gmra.mxu0 %v161
    %v201 = vpop.f32.mrf.mxu0
    %v202 = vadd.f32 %v137, %v201
    %203 = vmatmul.f32.gmra.mxu0 %v164
    %v204 = vpop.f32.mrf.mxu0
    %v205 = vadd.f32 %v140, %v204
    %206 = vmatmul.f32.gmra.mxu0 %v167
    %v207 = vpop.f32.mrf.mxu0
    %v208 = vadd.f32 %v143, %v207
    %209 = vmatmul.f32.gmra.mxu0 %v170
    %v210 = vpop.f32.mrf.mxu0
    %v211 = vadd.f32 %v146, %v210
    %212 = vmatmul.f32.gmra.mxu0 %v173
    %v213 = vpop.f32.mrf.mxu0
    %v214 = vadd.f32 %v149, %v213
    %215 = vdwg.mxu0
    %v216 = vld [vmem:[%s0 + $0x2] sm:$0xff]
    %v217 = vld [vmem:[%s0 + $0xa] sm:$0xff]
    %v218 = vld [vmem:[%s0 + $0x1a] sm:$0xff]
    %v219 = vld [vmem:[%s0 + $0x22] sm:$0xff]
    %v220 = vld [vmem:[%s0 + $0x32] sm:$0xff]
    %v221 = vld [vmem:[%s0 + $0x3a] sm:$0xff]
    %v222 = vld [vmem:[%s0 + $0x4a] sm:$0xff]
    %v223 = vld [vmem:[%s0 + $0x52] sm:$0xff]
    %s224 = scalar_lea.vmem %s2, 64
    %v225 = vld [vmem:[%s224] sm:$0xff]
    %v226 = vld [vmem:[%s224 + $0x8] sm:$0xff]
    %v227 = vld [vmem:[%s224 + $0x10] sm:$0xff]
    %v228 = vld [vmem:[%s224 + $0x18] sm:$0xff]
    %v230 = vsel %vm85, %v216, 0
    %v233 = vsel %vm85, %v217, 0
    %v236 = vsel %vm85, %v218, 0
    %v239 = vsel %vm85, %v219, 0
    %v242 = vsel %vm85, %v220, 0
    %v245 = vsel %vm85, %v221, 0
    %v248 = vsel %vm85, %v222, 0
    %v251 = vsel %vm85, %v223, 0
    %253 = vmatpush.msra.mxu0 0.0
    %254 = vmatpush.msra.mxu0 0.0
    %255 = vmatpush.msra.mxu0 0.0
    %256 = vmatpush.msra.mxu0 0.0
    %257 = vmatpush.msra.mxu0 0.0
    %258 = vmatpush.msra.mxu0 0.0
    %259 = vmatpush.msra.mxu0 0.0
    %260 = vmatpush.msra.mxu0 0.0
    %261 = vmatpush.msra.mxu0 0.0
    %262 = vmatpush.msra.mxu0 0.0
    %263 = vmatpush.msra.mxu0 0.0
    %264 = vmatpush.msra.mxu0 0.0
    %265 = vmatpush.msra.mxu0 %v228
    %266 = vmatpush.msra.mxu0 %v227
    %267 = vmatpush.msra.mxu0 %v226
    %268 = vmatpush.msra.mxu0 %v225
    %269 = vmatmul.f32.gmra.mxu0 %v230
    %v270 = vpop.f32.mrf.mxu0
    %v271 = vadd.f32 0.0, %v270
    %272 = vmatmul.f32.gmra.mxu0 %v233
    %v273 = vpop.f32.mrf.mxu0
    %v274 = vadd.f32 0.0, %v273
    %275 = vmatmul.f32.gmra.mxu0 %v236
    %v276 = vpop.f32.mrf.mxu0
    %v277 = vadd.f32 0.0, %v276
    %278 = vmatmul.f32.gmra.mxu0 %v239
    %v279 = vpop.f32.mrf.mxu0
    %v280 = vadd.f32 0.0, %v279
    %281 = vmatmul.f32.gmra.mxu0 %v242
    %v282 = vpop.f32.mrf.mxu0
    %v283 = vadd.f32 0.0, %v282
    %284 = vmatmul.f32.gmra.mxu0 %v245
    %v285 = vpop.f32.mrf.mxu0
    %v286 = vadd.f32 0.0, %v285
    %287 = vmatmul.f32.gmra.mxu0 %v248
    %v288 = vpop.f32.mrf.mxu0
    %v289 = vadd.f32 0.0, %v288
    %290 = vmatmul.f32.gmra.mxu0 %v251
    %v291 = vpop.f32.mrf.mxu0
    %v292 = vadd.f32 0.0, %v291
    %293 = vdwg.mxu0
    %v294 = vadd.f32 %v193, %v271
    %v295 = vadd.f32 %v196, %v274
    %v296 = vadd.f32 %v199, %v277
    %v297 = vadd.f32 %v202, %v280
    %v298 = vadd.f32 %v205, %v283
    %v299 = vadd.f32 %v208, %v286
    %v300 = vadd.f32 %v211, %v289
    %v301 = vadd.f32 %v214, %v292
    %v302 = vld [vmem:[%s3] sm:$0x1]
    %v304 = vperm.slane %v302, 0
    %v306 = vadd.f32 %v294, %v304
    %v307 = vadd.f32 %v295, %v304
    %v308 = vadd.f32 %v296, %v304
    %v309 = vadd.f32 %v297, %v304
    %v310 = vadd.f32 %v298, %v304
    %v311 = vadd.f32 %v299, %v304
    %v312 = vadd.f32 %v300, %v304
    %v313 = vadd.f32 %v301, %v304
    %v314 = vmax.f32 %v306, 0.0
    %v315 = vmax.f32 %v307, 0.0
    %v316 = vmax.f32 %v308, 0.0
    %v317 = vmax.f32 %v309, 0.0
    %v318 = vmax.f32 %v310, 0.0
    %v319 = vmax.f32 %v311, 0.0
    %v320 = vmax.f32 %v312, 0.0
    %v321 = vmax.f32 %v313, 0.0
    %v322 = vsel %vm85, %v314, 0.0
    %323 = vadd.xlane.f32.xlu0 %v322
    %v324 = vpop.xlane.xlu0 %323
    %v325 = vsel %vm85, %v315, 0.0
    %326 = vadd.xlane.f32.xlu0 %v325
    %v327 = vpop.xlane.xlu0 %326
    %v328 = vsel %vm85, %v316, 0.0
    %329 = vadd.xlane.f32.xlu0 %v328
    %v330 = vpop.xlane.xlu0 %329
    %v331 = vsel %vm85, %v317, 0.0
    %332 = vadd.xlane.f32.xlu0 %v331
    %v333 = vpop.xlane.xlu0 %332
    %v334 = vsel %vm85, %v318, 0.0
    %335 = vadd.xlane.f32.xlu0 %v334
    %v336 = vpop.xlane.xlu0 %335
    %v337 = vsel %vm85, %v319, 0.0
    %338 = vadd.xlane.f32.xlu0 %v337
    %v339 = vpop.xlane.xlu0 %338
    %v340 = vsel %vm85, %v320, 0.0
    %341 = vadd.xlane.f32.xlu0 %v340
    %v342 = vpop.xlane.xlu0 %341
    %v343 = vsel %vm85, %v321, 0.0
    %344 = vadd.xlane.f32.xlu0 %v343
    %v345 = vpop.xlane.xlu0 %344
    %v346 = vmul.f32 %v314, %v314
    %v347 = vmul.f32 %v315, %v315
    %v348 = vmul.f32 %v316, %v316
    %v349 = vmul.f32 %v317, %v317
    %v350 = vmul.f32 %v318, %v318
    %v351 = vmul.f32 %v319, %v319
    %v352 = vmul.f32 %v320, %v320
    %v353 = vmul.f32 %v321, %v321
    %v354 = vsel %vm85, %v346, 0.0
    %355 = vadd.xlane.f32.xlu0 %v354
    %v356 = vpop.xlane.xlu0 %355
    %v357 = vsel %vm85, %v347, 0.0
    %358 = vadd.xlane.f32.xlu0 %v357
    %v359 = vpop.xlane.xlu0 %358
    %v360 = vsel %vm85, %v348, 0.0
    %361 = vadd.xlane.f32.xlu0 %v360
    %v362 = vpop.xlane.xlu0 %361
    %v363 = vsel %vm85, %v349, 0.0
    %364 = vadd.xlane.f32.xlu0 %v363
    %v365 = vpop.xlane.xlu0 %364
    %v366 = vsel %vm85, %v350, 0.0
    %367 = vadd.xlane.f32.xlu0 %v366
    %v368 = vpop.xlane.xlu0 %367
    %v369 = vsel %vm85, %v351, 0.0
    %370 = vadd.xlane.f32.xlu0 %v369
    %v371 = vpop.xlane.xlu0 %370
    %v372 = vsel %vm85, %v352, 0.0
    %373 = vadd.xlane.f32.xlu0 %v372
    %v374 = vpop.xlane.xlu0 %373
    %v375 = vsel %vm85, %v353, 0.0
    %376 = vadd.xlane.f32.xlu0 %v375
    %v377 = vpop.xlane.xlu0 %376
    %v378 = vmul.f32 %v324, 0.03125
    %v379 = vmul.f32 %v327, 0.03125
    %v380 = vmul.f32 %v330, 0.03125
    %v381 = vmul.f32 %v333, 0.03125
    %v382 = vmul.f32 %v336, 0.03125
    %v383 = vmul.f32 %v339, 0.03125
    %v384 = vmul.f32 %v342, 0.03125
    %v385 = vmul.f32 %v345, 0.03125
    %v386 = vmul.f32 %v356, 0.03125
    %v387 = vmul.f32 %v359, 0.03125
    %v388 = vmul.f32 %v362, 0.03125
    %v389 = vmul.f32 %v365, 0.03125
    %v390 = vmul.f32 %v368, 0.03125
    %v391 = vmul.f32 %v371, 0.03125
    %v392 = vmul.f32 %v374, 0.03125
    %v393 = vmul.f32 %v377, 0.03125
    %v394 = vmul.f32 %v378, %v378
    %v395 = vmul.f32 %v379, %v379
    %v396 = vmul.f32 %v380, %v380
    %v397 = vmul.f32 %v381, %v381
    %v398 = vmul.f32 %v382, %v382
    %v399 = vmul.f32 %v383, %v383
    %v400 = vmul.f32 %v384, %v384
    %v401 = vmul.f32 %v385, %v385
    %v402 = vsub.f32 %v386, %v394
    %v403 = vsub.f32 %v387, %v395
    %v404 = vsub.f32 %v388, %v396
    %v405 = vsub.f32 %v389, %v397
    %v406 = vsub.f32 %v390, %v398
    %v407 = vsub.f32 %v391, %v399
    %v408 = vsub.f32 %v392, %v400
    %v409 = vsub.f32 %v393, %v401
    %v410 = vmax.f32 %v402, 0.0
    %v411 = vmax.f32 %v403, 0.0
    %v412 = vmax.f32 %v404, 0.0
    %v413 = vmax.f32 %v405, 0.0
    %v414 = vmax.f32 %v406, 0.0
    %v415 = vmax.f32 %v407, 0.0
    %v416 = vmax.f32 %v408, 0.0
    %v417 = vmax.f32 %v409, 0.0
    %v418 = vsub.f32 %v314, %v378
    %v419 = vsub.f32 %v315, %v379
    %v420 = vsub.f32 %v316, %v380
    %v421 = vsub.f32 %v317, %v381
    %v422 = vsub.f32 %v318, %v382
    %v423 = vsub.f32 %v319, %v383
    %v424 = vsub.f32 %v320, %v384
    %v425 = vsub.f32 %v321, %v385
    %v426 = vadd.f32 %v410, 1e-05
    %v427 = vadd.f32 %v411, 1e-05
    %v428 = vadd.f32 %v412, 1e-05
    %v429 = vadd.f32 %v413, 1e-05
    %v430 = vadd.f32 %v414, 1e-05
    %v431 = vadd.f32 %v415, 1e-05
    %v432 = vadd.f32 %v416, 1e-05
    %v433 = vadd.f32 %v417, 1e-05
    %v434 = vrsqrt.pop %v426
    %v435 = vmul.f32 %v434, %v426
    %v436 = vmul.f32 %v435, %v434
    %v437 = vmul.f32 0.5, %v436
    %v438 = vsub.f32 1.5, %v437
    %v439 = vmul.f32 %v434, %v438
    %vm440 = vweird.f32 %v426
    %vm441 = vweird.f32 %v434
    %vm442 = vmor %vm440, %vm441
    %v443 = vsel %vm442, %v434, %v439
    %v444 = vrsqrt.pop %v427
    %v445 = vmul.f32 %v444, %v427
    %v446 = vmul.f32 %v445, %v444
    %v447 = vmul.f32 0.5, %v446
    %v448 = vsub.f32 1.5, %v447
    %v449 = vmul.f32 %v444, %v448
    %vm450 = vweird.f32 %v427
    %vm451 = vweird.f32 %v444
    %vm452 = vmor %vm450, %vm451
    %v453 = vsel %vm452, %v444, %v449
    %v454 = vrsqrt.pop %v428
    %v455 = vmul.f32 %v454, %v428
    %v456 = vmul.f32 %v455, %v454
    %v457 = vmul.f32 0.5, %v456
    %v458 = vsub.f32 1.5, %v457
    %v459 = vmul.f32 %v454, %v458
    %vm460 = vweird.f32 %v428
    %vm461 = vweird.f32 %v454
    %vm462 = vmor %vm460, %vm461
    %v463 = vsel %vm462, %v454, %v459
    %v464 = vrsqrt.pop %v429
    %v465 = vmul.f32 %v464, %v429
    %v466 = vmul.f32 %v465, %v464
    %v467 = vmul.f32 0.5, %v466
    %v468 = vsub.f32 1.5, %v467
    %v469 = vmul.f32 %v464, %v468
    %vm470 = vweird.f32 %v429
    %vm471 = vweird.f32 %v464
    %vm472 = vmor %vm470, %vm471
    %v473 = vsel %vm472, %v464, %v469
    %v474 = vrsqrt.pop %v430
    %v475 = vmul.f32 %v474, %v430
    %v476 = vmul.f32 %v475, %v474
    %v477 = vmul.f32 0.5, %v476
    %v478 = vsub.f32 1.5, %v477
    %v479 = vmul.f32 %v474, %v478
    %vm480 = vweird.f32 %v430
    %vm481 = vweird.f32 %v474
    %vm482 = vmor %vm480, %vm481
    %v483 = vsel %vm482, %v474, %v479
    %v484 = vrsqrt.pop %v431
    %v485 = vmul.f32 %v484, %v431
    %v486 = vmul.f32 %v485, %v484
    %v487 = vmul.f32 0.5, %v486
    %v488 = vsub.f32 1.5, %v487
    %v489 = vmul.f32 %v484, %v488
    %vm490 = vweird.f32 %v431
    %vm491 = vweird.f32 %v484
    %vm492 = vmor %vm490, %vm491
    %v493 = vsel %vm492, %v484, %v489
    %v494 = vrsqrt.pop %v432
    %v495 = vmul.f32 %v494, %v432
    %v496 = vmul.f32 %v495, %v494
    %v497 = vmul.f32 0.5, %v496
    %v498 = vsub.f32 1.5, %v497
    %v499 = vmul.f32 %v494, %v498
    %vm500 = vweird.f32 %v432
    %vm501 = vweird.f32 %v494
    %vm502 = vmor %vm500, %vm501
    %v503 = vsel %vm502, %v494, %v499
    %v504 = vrsqrt.pop %v433
    %v505 = vmul.f32 %v504, %v433
    %v506 = vmul.f32 %v505, %v504
    %v507 = vmul.f32 0.5, %v506
    %v508 = vsub.f32 1.5, %v507
    %v509 = vmul.f32 %v504, %v508
    %vm510 = vweird.f32 %v433
    %vm511 = vweird.f32 %v504
    %vm512 = vmor %vm510, %vm511
    %v513 = vsel %vm512, %v504, %v509
    %v514 = vmul.f32 %v418, %v443
    %v515 = vmul.f32 %v419, %v453
    %v516 = vmul.f32 %v420, %v463
    %v517 = vmul.f32 %v421, %v473
    %v518 = vmul.f32 %v422, %v483
    %v519 = vmul.f32 %v423, %v493
    %v520 = vmul.f32 %v424, %v503
    %v521 = vmul.f32 %v425, %v513
    %v522 = vld [vmem:[%s4] sm:$0x1]
    %v524 = vperm.slane %v522, 0
    %v526 = vmul.f32 %v514, %v524
    %v527 = vmul.f32 %v515, %v524
    %v528 = vmul.f32 %v516, %v524
    %v529 = vmul.f32 %v517, %v524
    %v530 = vmul.f32 %v518, %v524
    %v531 = vmul.f32 %v519, %v524
    %v532 = vmul.f32 %v520, %v524
    %v533 = vmul.f32 %v521, %v524
    %v534 = vld [vmem:[%s5] sm:$0x1]
    %v536 = vperm.slane %v534, 0
    %v538 = vadd.f32 %v526, %v536
    %v539 = vadd.f32 %v527, %v536
    %v540 = vadd.f32 %v528, %v536
    %v541 = vadd.f32 %v529, %v536
    %v542 = vadd.f32 %v530, %v536
    %v543 = vadd.f32 %v531, %v536
    %v544 = vadd.f32 %v532, %v536
    %v545 = vadd.f32 %v533, %v536
    %546 = vst.msk [vmem:[#allocation2] sm:$0xff] %vm85, 0.0
    %547 = vst.msk [vmem:[#allocation2 + $0x20] sm:$0xff] %vm85, 0.0
    %548 = vst.msk [vmem:[#allocation2 + $0x40] sm:$0xff] %vm85, 0.0
    %549 = vst.msk [vmem:[#allocation2 + $0x60] sm:$0xff] %vm85, 0.0
    %vm550 = vcmask 253952
    %551 = vst.msk [vmem:[#allocation2 + $0x18] sm:$0x1] %vm550, 0.0
    %552 = vst.msk [vmem:[#allocation2 + $0x38] sm:$0x1] %vm550, 0.0
    %553 = vst.msk [vmem:[#allocation2 + $0x58] sm:$0x1] %vm550, 0.0
    %554 = vst.msk [vmem:[#allocation2 + $0x78] sm:$0x1] %vm550, 0.0
    %555 = vst.msk [vmem:[#allocation2 + $0x8] sm:$0xff] %vm85, %v538
    %556 = vst.msk [vmem:[#allocation2 + $0x10] sm:$0xff] %vm85, %v539
    %557 = vst.msk [vmem:[#allocation2 + $0x28] sm:$0xff] %vm85, %v540
    %558 = vst.msk [vmem:[#allocation2 + $0x30] sm:$0xff] %vm85, %v541
    %559 = vst.msk [vmem:[#allocation2 + $0x48] sm:$0xff] %vm85, %v542
    %560 = vst.msk [vmem:[#allocation2 + $0x50] sm:$0xff] %vm85, %v543
    %561 = vst.msk [vmem:[#allocation2 + $0x68] sm:$0xff] %vm85, %v544
    %562 = vst.msk [vmem:[#allocation2 + $0x70] sm:$0xff] %vm85, %v545
    %v563 = vld [vmem:[#allocation2 + $0x7] sm:$0xff]
    %v564 = vld [vmem:[#allocation2 + $0xf] sm:$0xff]
    %v565 = vld [vmem:[#allocation2 + $0x27] sm:$0xff]
    %v566 = vld [vmem:[#allocation2 + $0x2f] sm:$0xff]
    %v567 = vld [vmem:[#allocation2 + $0x47] sm:$0xff]
    %v568 = vld [vmem:[#allocation2 + $0x4f] sm:$0xff]
    %v569 = vld [vmem:[#allocation2 + $0x67] sm:$0xff]
    %v570 = vld [vmem:[#allocation2 + $0x6f] sm:$0xff]
    %v571 = vld [vmem:[#allocation4] sm:$0xff]
    %v572 = vld [vmem:[#allocation4 + $0x8] sm:$0xff]
    %v573 = vld [vmem:[#allocation4 + $0x10] sm:$0xff]
    %v574 = vld [vmem:[#allocation4 + $0x18] sm:$0xff]
    %v575 = vld [vmem:[#allocation2 + $0x8] sm:$0xff]
    %v576 = vld [vmem:[#allocation2 + $0x10] sm:$0xff]
    %v577 = vld [vmem:[#allocation2 + $0x28] sm:$0xff]
    %v578 = vld [vmem:[#allocation2 + $0x30] sm:$0xff]
    %v579 = vld [vmem:[#allocation2 + $0x48] sm:$0xff]
    %v580 = vld [vmem:[#allocation2 + $0x50] sm:$0xff]
    %v581 = vld [vmem:[#allocation2 + $0x68] sm:$0xff]
    %v582 = vld [vmem:[#allocation2 + $0x70] sm:$0xff]
    %s583 = scalar_lea.vmem [#allocation4], 32
    %v584 = vld [vmem:[%s583] sm:$0xff]
    %v585 = vld [vmem:[%s583 + $0x8] sm:$0xff]
    %v586 = vld [vmem:[%s583 + $0x10] sm:$0xff]
    %v587 = vld [vmem:[%s583 + $0x18] sm:$0xff]
    %v589 = vsel %vm85, %v575, 0
    %v592 = vsel %vm85, %v576, 0
    %v595 = vsel %vm85, %v577, 0
    %v598 = vsel %vm85, %v578, 0
    %v601 = vsel %vm85, %v579, 0
    %v604 = vsel %vm85, %v580, 0
    %v607 = vsel %vm85, %v581, 0
    %v610 = vsel %vm85, %v582, 0
    %612 = vmatpush.msra.mxu0 0.0
    %613 = vmatpush.msra.mxu0 0.0
    %614 = vmatpush.msra.mxu0 0.0
    %615 = vmatpush.msra.mxu0 0.0
    %616 = vmatpush.msra.mxu0 0.0
    %617 = vmatpush.msra.mxu0 0.0
    %618 = vmatpush.msra.mxu0 0.0
    %619 = vmatpush.msra.mxu0 0.0
    %620 = vmatpush.msra.mxu0 0.0
    %621 = vmatpush.msra.mxu0 0.0
    %622 = vmatpush.msra.mxu0 0.0
    %623 = vmatpush.msra.mxu0 0.0
    %624 = vmatpush.msra.mxu0 %v587
    %625 = vmatpush.msra.mxu0 %v586
    %626 = vmatpush.msra.mxu0 %v585
    %627 = vmatpush.msra.mxu0 %v584
    %628 = vmatmul.f32.gmra.mxu0 %v589
    %v629 = vpop.f32.mrf.mxu0
    %v630 = vadd.f32 0.0, %v629
    %631 = vmatmul.f32.gmra.mxu0 %v592
    %v632 = vpop.f32.mrf.mxu0
    %v633 = vadd.f32 0.0, %v632
    %634 = vmatmul.f32.gmra.mxu0 %v595
    %v635 = vpop.f32.mrf.mxu0
    %v636 = vadd.f32 0.0, %v635
    %637 = vmatmul.f32.gmra.mxu0 %v598
    %v638 = vpop.f32.mrf.mxu0
    %v639 = vadd.f32 0.0, %v638
    %640 = vmatmul.f32.gmra.mxu0 %v601
    %v641 = vpop.f32.mrf.mxu0
    %v642 = vadd.f32 0.0, %v641
    %643 = vmatmul.f32.gmra.mxu0 %v604
    %v644 = vpop.f32.mrf.mxu0
    %v645 = vadd.f32 0.0, %v644
    %646 = vmatmul.f32.gmra.mxu0 %v607
    %v647 = vpop.f32.mrf.mxu0
    %v648 = vadd.f32 0.0, %v647
    %649 = vmatmul.f32.gmra.mxu0 %v610
    %v650 = vpop.f32.mrf.mxu0
    %v651 = vadd.f32 0.0, %v650
    %652 = vdwg.mxu0
    %v654 = vsel %vm85, %v563, 0
    %v657 = vsel %vm85, %v564, 0
    %v660 = vsel %vm85, %v565, 0
    %v663 = vsel %vm85, %v566, 0
    %v666 = vsel %vm85, %v567, 0
    %v669 = vsel %vm85, %v568, 0
    %v672 = vsel %vm85, %v569, 0
    %v675 = vsel %vm85, %v570, 0
    %677 = vmatpush.msra.mxu0 0.0
    %678 = vmatpush.msra.mxu0 0.0
    %679 = vmatpush.msra.mxu0 0.0
    %680 = vmatpush.msra.mxu0 0.0
    %681 = vmatpush.msra.mxu0 0.0
    %682 = vmatpush.msra.mxu0 0.0
    %683 = vmatpush.msra.mxu0 0.0
    %684 = vmatpush.msra.mxu0 0.0
    %685 = vmatpush.msra.mxu0 0.0
    %686 = vmatpush.msra.mxu0 0.0
    %687 = vmatpush.msra.mxu0 0.0
    %688 = vmatpush.msra.mxu0 0.0
    %689 = vmatpush.msra.mxu0 %v574
    %690 = vmatpush.msra.mxu0 %v573
    %691 = vmatpush.msra.mxu0 %v572
    %692 = vmatpush.msra.mxu0 %v571
    %693 = vmatmul.f32.gmra.mxu0 %v654
    %v694 = vpop.f32.mrf.mxu0
    %v695 = vadd.f32 %v630, %v694
    %696 = vmatmul.f32.gmra.mxu0 %v657
    %v697 = vpop.f32.mrf.mxu0
    %v698 = vadd.f32 %v633, %v697
    %699 = vmatmul.f32.gmra.mxu0 %v660
    %v700 = vpop.f32.mrf.mxu0
    %v701 = vadd.f32 %v636, %v700
    %702 = vmatmul.f32.gmra.mxu0 %v663
    %v703 = vpop.f32.mrf.mxu0
    %v704 = vadd.f32 %v639, %v703
    %705 = vmatmul.f32.gmra.mxu0 %v666
    %v706 = vpop.f32.mrf.mxu0
    %v707 = vadd.f32 %v642, %v706
    %708 = vmatmul.f32.gmra.mxu0 %v669
    %v709 = vpop.f32.mrf.mxu0
    %v710 = vadd.f32 %v645, %v709
    %711 = vmatmul.f32.gmra.mxu0 %v672
    %v712 = vpop.f32.mrf.mxu0
    %v713 = vadd.f32 %v648, %v712
    %714 = vmatmul.f32.gmra.mxu0 %v675
    %v715 = vpop.f32.mrf.mxu0
    %v716 = vadd.f32 %v651, %v715
    %717 = vdwg.mxu0
    %v718 = vld [vmem:[#allocation2 + $0x9] sm:$0xff]
    %v719 = vld [vmem:[#allocation2 + $0x11] sm:$0xff]
    %v720 = vld [vmem:[#allocation2 + $0x29] sm:$0xff]
    %v721 = vld [vmem:[#allocation2 + $0x31] sm:$0xff]
    %v722 = vld [vmem:[#allocation2 + $0x49] sm:$0xff]
    %v723 = vld [vmem:[#allocation2 + $0x51] sm:$0xff]
    %v724 = vld [vmem:[#allocation2 + $0x69] sm:$0xff]
    %v725 = vld [vmem:[#allocation2 + $0x71] sm:$0xff]
    %s726 = scalar_lea.vmem [#allocation4], 64
    %v727 = vld [vmem:[%s726] sm:$0xff]
    %v728 = vld [vmem:[%s726 + $0x8] sm:$0xff]
    %v729 = vld [vmem:[%s726 + $0x10] sm:$0xff]
    %v730 = vld [vmem:[%s726 + $0x18] sm:$0xff]
    %v732 = vsel %vm85, %v718, 0
    %v735 = vsel %vm85, %v719, 0
    %v738 = vsel %vm85, %v720, 0
    %v741 = vsel %vm85, %v721, 0
    %v744 = vsel %vm85, %v722, 0
    %v747 = vsel %vm85, %v723, 0
    %v750 = vsel %vm85, %v724, 0
    %v753 = vsel %vm85, %v725, 0
    %755 = vmatpush.msra.mxu0 0.0
    %756 = vmatpush.msra.mxu0 0.0
    %757 = vmatpush.msra.mxu0 0.0
    %758 = vmatpush.msra.mxu0 0.0
    %759 = vmatpush.msra.mxu0 0.0
    %760 = vmatpush.msra.mxu0 0.0
    %761 = vmatpush.msra.mxu0 0.0
    %762 = vmatpush.msra.mxu0 0.0
    %763 = vmatpush.msra.mxu0 0.0
    %764 = vmatpush.msra.mxu0 0.0
    %765 = vmatpush.msra.mxu0 0.0
    %766 = vmatpush.msra.mxu0 0.0
    %767 = vmatpush.msra.mxu0 %v730
    %768 = vmatpush.msra.mxu0 %v729
    %769 = vmatpush.msra.mxu0 %v728
    %770 = vmatpush.msra.mxu0 %v727
    %771 = vmatmul.f32.gmra.mxu0 %v732
    %v772 = vpop.f32.mrf.mxu0
    %v773 = vadd.f32 0.0, %v772
    %774 = vmatmul.f32.gmra.mxu0 %v735
    %v775 = vpop.f32.mrf.mxu0
    %v776 = vadd.f32 0.0, %v775
    %777 = vmatmul.f32.gmra.mxu0 %v738
    %v778 = vpop.f32.mrf.mxu0
    %v779 = vadd.f32 0.0, %v778
    %780 = vmatmul.f32.gmra.mxu0 %v741
    %v781 = vpop.f32.mrf.mxu0
    %v782 = vadd.f32 0.0, %v781
    %783 = vmatmul.f32.gmra.mxu0 %v744
    %v784 = vpop.f32.mrf.mxu0
    %v785 = vadd.f32 0.0, %v784
    %786 = vmatmul.f32.gmra.mxu0 %v747
    %v787 = vpop.f32.mrf.mxu0
    %v788 = vadd.f32 0.0, %v787
    %789 = vmatmul.f32.gmra.mxu0 %v750
    %v790 = vpop.f32.mrf.mxu0
    %v791 = vadd.f32 0.0, %v790
    %792 = vmatmul.f32.gmra.mxu0 %v753
    %v793 = vpop.f32.mrf.mxu0
    %v794 = vadd.f32 0.0, %v793
    %795 = vdwg.mxu0
    %v796 = vadd.f32 %v695, %v773
    %v797 = vadd.f32 %v698, %v776
    %v798 = vadd.f32 %v701, %v779
    %v799 = vadd.f32 %v704, %v782
    %v800 = vadd.f32 %v707, %v785
    %v801 = vadd.f32 %v710, %v788
    %v802 = vadd.f32 %v713, %v791
    %v803 = vadd.f32 %v716, %v794
    %v804 = vld [vmem:[%s7] sm:$0x1]
    %v806 = vperm.slane %v804, 0
    %v808 = vadd.f32 %v796, %v806
    %v809 = vadd.f32 %v797, %v806
    %v810 = vadd.f32 %v798, %v806
    %v811 = vadd.f32 %v799, %v806
    %v812 = vadd.f32 %v800, %v806
    %v813 = vadd.f32 %v801, %v806
    %v814 = vadd.f32 %v802, %v806
    %v815 = vadd.f32 %v803, %v806
    %v816 = vmax.f32 %v808, 0.0
    %v817 = vmax.f32 %v809, 0.0
    %v818 = vmax.f32 %v810, 0.0
    %v819 = vmax.f32 %v811, 0.0
    %v820 = vmax.f32 %v812, 0.0
    %v821 = vmax.f32 %v813, 0.0
    %v822 = vmax.f32 %v814, 0.0
    %v823 = vmax.f32 %v815, 0.0
    %v824 = vsel %vm85, %v816, 0.0
    %825 = vadd.xlane.f32.xlu0 %v824
    %v826 = vpop.xlane.xlu0 %825
    %v827 = vsel %vm85, %v817, 0.0
    %828 = vadd.xlane.f32.xlu0 %v827
    %v829 = vpop.xlane.xlu0 %828
    %v830 = vsel %vm85, %v818, 0.0
    %831 = vadd.xlane.f32.xlu0 %v830
    %v832 = vpop.xlane.xlu0 %831
    %v833 = vsel %vm85, %v819, 0.0
    %834 = vadd.xlane.f32.xlu0 %v833
    %v835 = vpop.xlane.xlu0 %834
    %v836 = vsel %vm85, %v820, 0.0
    %837 = vadd.xlane.f32.xlu0 %v836
    %v838 = vpop.xlane.xlu0 %837
    %v839 = vsel %vm85, %v821, 0.0
    %840 = vadd.xlane.f32.xlu0 %v839
    %v841 = vpop.xlane.xlu0 %840
    %v842 = vsel %vm85, %v822, 0.0
    %843 = vadd.xlane.f32.xlu0 %v842
    %v844 = vpop.xlane.xlu0 %843
    %v845 = vsel %vm85, %v823, 0.0
    %846 = vadd.xlane.f32.xlu0 %v845
    %v847 = vpop.xlane.xlu0 %846
    %v848 = vmul.f32 %v816, %v816
    %v849 = vmul.f32 %v817, %v817
    %v850 = vmul.f32 %v818, %v818
    %v851 = vmul.f32 %v819, %v819
    %v852 = vmul.f32 %v820, %v820
    %v853 = vmul.f32 %v821, %v821
    %v854 = vmul.f32 %v822, %v822
    %v855 = vmul.f32 %v823, %v823
    %v856 = vsel %vm85, %v848, 0.0
    %857 = vadd.xlane.f32.xlu0 %v856
    %v858 = vpop.xlane.xlu0 %857
    %v859 = vsel %vm85, %v849, 0.0
    %860 = vadd.xlane.f32.xlu0 %v859
    %v861 = vpop.xlane.xlu0 %860
    %v862 = vsel %vm85, %v850, 0.0
    %863 = vadd.xlane.f32.xlu0 %v862
    %v864 = vpop.xlane.xlu0 %863
    %v865 = vsel %vm85, %v851, 0.0
    %866 = vadd.xlane.f32.xlu0 %v865
    %v867 = vpop.xlane.xlu0 %866
    %v868 = vsel %vm85, %v852, 0.0
    %869 = vadd.xlane.f32.xlu0 %v868
    %v870 = vpop.xlane.xlu0 %869
    %v871 = vsel %vm85, %v853, 0.0
    %872 = vadd.xlane.f32.xlu0 %v871
    %v873 = vpop.xlane.xlu0 %872
    %v874 = vsel %vm85, %v854, 0.0
    %875 = vadd.xlane.f32.xlu0 %v874
    %v876 = vpop.xlane.xlu0 %875
    %v877 = vsel %vm85, %v855, 0.0
    %878 = vadd.xlane.f32.xlu0 %v877
    %v879 = vpop.xlane.xlu0 %878
    %v880 = vmul.f32 %v826, 0.03125
    %v881 = vmul.f32 %v829, 0.03125
    %v882 = vmul.f32 %v832, 0.03125
    %v883 = vmul.f32 %v835, 0.03125
    %v884 = vmul.f32 %v838, 0.03125
    %v885 = vmul.f32 %v841, 0.03125
    %v886 = vmul.f32 %v844, 0.03125
    %v887 = vmul.f32 %v847, 0.03125
    %v888 = vmul.f32 %v858, 0.03125
    %v889 = vmul.f32 %v861, 0.03125
    %v890 = vmul.f32 %v864, 0.03125
    %v891 = vmul.f32 %v867, 0.03125
    %v892 = vmul.f32 %v870, 0.03125
    %v893 = vmul.f32 %v873, 0.03125
    %v894 = vmul.f32 %v876, 0.03125
    %v895 = vmul.f32 %v879, 0.03125
    %v896 = vmul.f32 %v880, %v880
    %v897 = vmul.f32 %v881, %v881
    %v898 = vmul.f32 %v882, %v882
    %v899 = vmul.f32 %v883, %v883
    %v900 = vmul.f32 %v884, %v884
    %v901 = vmul.f32 %v885, %v885
    %v902 = vmul.f32 %v886, %v886
    %v903 = vmul.f32 %v887, %v887
    %v904 = vsub.f32 %v888, %v896
    %v905 = vsub.f32 %v889, %v897
    %v906 = vsub.f32 %v890, %v898
    %v907 = vsub.f32 %v891, %v899
    %v908 = vsub.f32 %v892, %v900
    %v909 = vsub.f32 %v893, %v901
    %v910 = vsub.f32 %v894, %v902
    %v911 = vsub.f32 %v895, %v903
    %v912 = vmax.f32 %v904, 0.0
    %v913 = vmax.f32 %v905, 0.0
    %v914 = vmax.f32 %v906, 0.0
    %v915 = vmax.f32 %v907, 0.0
    %v916 = vmax.f32 %v908, 0.0
    %v917 = vmax.f32 %v909, 0.0
    %v918 = vmax.f32 %v910, 0.0
    %v919 = vmax.f32 %v911, 0.0
    %v920 = vsub.f32 %v816, %v880
    %v921 = vsub.f32 %v817, %v881
    %v922 = vsub.f32 %v818, %v882
    %v923 = vsub.f32 %v819, %v883
    %v924 = vsub.f32 %v820, %v884
    %v925 = vsub.f32 %v821, %v885
    %v926 = vsub.f32 %v822, %v886
    %v927 = vsub.f32 %v823, %v887
    %v928 = vadd.f32 %v912, 1e-05
    %v929 = vadd.f32 %v913, 1e-05
    %v930 = vadd.f32 %v914, 1e-05
    %v931 = vadd.f32 %v915, 1e-05
    %v932 = vadd.f32 %v916, 1e-05
    %v933 = vadd.f32 %v917, 1e-05
    %v934 = vadd.f32 %v918, 1e-05
    %v935 = vadd.f32 %v919, 1e-05
    %v936 = vrsqrt.pop %v928
    %v937 = vmul.f32 %v936, %v928
    %v938 = vmul.f32 %v937, %v936
    %v939 = vmul.f32 0.5, %v938
    %v940 = vsub.f32 1.5, %v939
    %v941 = vmul.f32 %v936, %v940
    %vm942 = vweird.f32 %v928
    %vm943 = vweird.f32 %v936
    %vm944 = vmor %vm942, %vm943
    %v945 = vsel %vm944, %v936, %v941
    %v946 = vrsqrt.pop %v929
    %v947 = vmul.f32 %v946, %v929
    %v948 = vmul.f32 %v947, %v946
    %v949 = vmul.f32 0.5, %v948
    %v950 = vsub.f32 1.5, %v949
    %v951 = vmul.f32 %v946, %v950
    %vm952 = vweird.f32 %v929
    %vm953 = vweird.f32 %v946
    %vm954 = vmor %vm952, %vm953
    %v955 = vsel %vm954, %v946, %v951
    %v956 = vrsqrt.pop %v930
    %v957 = vmul.f32 %v956, %v930
    %v958 = vmul.f32 %v957, %v956
    %v959 = vmul.f32 0.5, %v958
    %v960 = vsub.f32 1.5, %v959
    %v961 = vmul.f32 %v956, %v960
    %vm962 = vweird.f32 %v930
    %vm963 = vweird.f32 %v956
    %vm964 = vmor %vm962, %vm963
    %v965 = vsel %vm964, %v956, %v961
    %v966 = vrsqrt.pop %v931
    %v967 = vmul.f32 %v966, %v931
    %v968 = vmul.f32 %v967, %v966
    %v969 = vmul.f32 0.5, %v968
    %v970 = vsub.f32 1.5, %v969
    %v971 = vmul.f32 %v966, %v970
    %vm972 = vweird.f32 %v931
    %vm973 = vweird.f32 %v966
    %vm974 = vmor %vm972, %vm973
    %v975 = vsel %vm974, %v966, %v971
    %v976 = vrsqrt.pop %v932
    %v977 = vmul.f32 %v976, %v932
    %v978 = vmul.f32 %v977, %v976
    %v979 = vmul.f32 0.5, %v978
    %v980 = vsub.f32 1.5, %v979
    %v981 = vmul.f32 %v976, %v980
    %vm982 = vweird.f32 %v932
    %vm983 = vweird.f32 %v976
    %vm984 = vmor %vm982, %vm983
    %v985 = vsel %vm984, %v976, %v981
    %v986 = vrsqrt.pop %v933
    %v987 = vmul.f32 %v986, %v933
    %v988 = vmul.f32 %v987, %v986
    %v989 = vmul.f32 0.5, %v988
    %v990 = vsub.f32 1.5, %v989
    %v991 = vmul.f32 %v986, %v990
    %vm992 = vweird.f32 %v933
    %vm993 = vweird.f32 %v986
    %vm994 = vmor %vm992, %vm993
    %v995 = vsel %vm994, %v986, %v991
    %v996 = vrsqrt.pop %v934
    %v997 = vmul.f32 %v996, %v934
    %v998 = vmul.f32 %v997, %v996
    %v999 = vmul.f32 0.5, %v998
    %v1000 = vsub.f32 1.5, %v999
    %v1001 = vmul.f32 %v996, %v1000
    %vm1002 = vweird.f32 %v934
    %vm1003 = vweird.f32 %v996
    %vm1004 = vmor %vm1002, %vm1003
    %v1005 = vsel %vm1004, %v996, %v1001
    %v1006 = vrsqrt.pop %v935
    %v1007 = vmul.f32 %v1006, %v935
    %v1008 = vmul.f32 %v1007, %v1006
    %v1009 = vmul.f32 0.5, %v1008
    %v1010 = vsub.f32 1.5, %v1009
    %v1011 = vmul.f32 %v1006, %v1010
    %vm1012 = vweird.f32 %v935
    %vm1013 = vweird.f32 %v1006
    %vm1014 = vmor %vm1012, %vm1013
    %v1015 = vsel %vm1014, %v1006, %v1011
    %v1016 = vmul.f32 %v920, %v945
    %v1017 = vmul.f32 %v921, %v955
    %v1018 = vmul.f32 %v922, %v965
    %v1019 = vmul.f32 %v923, %v975
    %v1020 = vmul.f32 %v924, %v985
    %v1021 = vmul.f32 %v925, %v995
    %v1022 = vmul.f32 %v926, %v1005
    %v1023 = vmul.f32 %v927, %v1015
    %v1024 = vld [vmem:[%s8] sm:$0x1]
    %v1026 = vperm.slane %v1024, 0
    %v1028 = vmul.f32 %v1016, %v1026
    %v1029 = vmul.f32 %v1017, %v1026
    %v1030 = vmul.f32 %v1018, %v1026
    %v1031 = vmul.f32 %v1019, %v1026
    %v1032 = vmul.f32 %v1020, %v1026
    %v1033 = vmul.f32 %v1021, %v1026
    %v1034 = vmul.f32 %v1022, %v1026
    %v1035 = vmul.f32 %v1023, %v1026
    %v1036 = vld [vmem:[%s9] sm:$0x1]
    %v1038 = vperm.slane %v1036, 0
    %v1040 = vadd.f32 %v1028, %v1038
    %v1041 = vadd.f32 %v1029, %v1038
    %v1042 = vadd.f32 %v1030, %v1038
    %v1043 = vadd.f32 %v1031, %v1038
    %v1044 = vadd.f32 %v1032, %v1038
    %v1045 = vadd.f32 %v1033, %v1038
    %v1046 = vadd.f32 %v1034, %v1038
    %v1047 = vadd.f32 %v1035, %v1038
    %v1048 = vld [vmem:[%s10] sm:$0x1]
    %v1050 = vperm.slane %v1048, 0
    %v1052 = vmul.f32 %v1040, %v1050
    %v1053 = vmul.f32 %v1041, %v1050
    %v1054 = vmul.f32 %v1042, %v1050
    %v1055 = vmul.f32 %v1043, %v1050
    %v1056 = vmul.f32 %v1044, %v1050
    %v1057 = vmul.f32 %v1045, %v1050
    %v1058 = vmul.f32 %v1046, %v1050
    %v1059 = vmul.f32 %v1047, %v1050
    %v1060 = vsel %vm85, %v1052, 0.0
    %1061 = vadd.xlane.f32.xlu0 %v1060
    %v1062 = vpop.xlane.xlu0 %1061
    %v1063 = vsel %vm85, %v1053, 0.0
    %1064 = vadd.xlane.f32.xlu0 %v1063
    %v1065 = vpop.xlane.xlu0 %1064
    %v1066 = vsel %vm85, %v1054, 0.0
    %1067 = vadd.xlane.f32.xlu0 %v1066
    %v1068 = vpop.xlane.xlu0 %1067
    %v1069 = vsel %vm85, %v1055, 0.0
    %1070 = vadd.xlane.f32.xlu0 %v1069
    %v1071 = vpop.xlane.xlu0 %1070
    %v1072 = vsel %vm85, %v1056, 0.0
    %1073 = vadd.xlane.f32.xlu0 %v1072
    %v1074 = vpop.xlane.xlu0 %1073
    %v1075 = vsel %vm85, %v1057, 0.0
    %1076 = vadd.xlane.f32.xlu0 %v1075
    %v1077 = vpop.xlane.xlu0 %1076
    %v1078 = vsel %vm85, %v1058, 0.0
    %1079 = vadd.xlane.f32.xlu0 %v1078
    %v1080 = vpop.xlane.xlu0 %1079
    %v1081 = vsel %vm85, %v1059, 0.0
    %1082 = vadd.xlane.f32.xlu0 %v1081
    %v1083 = vpop.xlane.xlu0 %1082
    %v1084 = vld [vmem:[#allocation3] sm:$0x1]
    %v1086 = vperm.slane %v1084, 0
    %1087 = vset.pattern.permute.xlu0 0
    %1088 = vperm.xlu0 %1087, %v1086
    %v1089 = vpop.permute.xlu0 %1088
    %v1091 = vadd.f32 %v1062, %v1089
    %v1092 = vadd.f32 %v1065, %v1089
    %v1093 = vadd.f32 %v1068, %v1089
    %v1094 = vadd.f32 %v1071, %v1089
    %v1095 = vadd.f32 %v1074, %v1089
    %v1096 = vadd.f32 %v1077, %v1089
    %v1097 = vadd.f32 %v1080, %v1089
    %v1098 = vadd.f32 %v1083, %v1089
    %v1099 = vld [vmem:[%s1] sm:$0xf]
    %v1101 = vperm.slane %v1099, 0
    %v1102 = vlaneseq
    %v1103 = vshrl.u32 %v1102, 7
    %1105 = vset.pattern.permute.xlu0 %v1103
    %1106 = vperm.xlu0 %1105, %v1101
    %v1107 = vpop.permute.xlu0 %1106
    %v1108 = vlaneseq
    %v1109 = vshrl.u32 %v1108, 7
    %v1110 = vadd.s32 %v1109, 8
    %1111 = vset.pattern.permute.xlu0 %v1110
    %1112 = vperm.xlu0 %1111, %v1101
    %v1113 = vpop.permute.xlu0 %1112
    %v1114 = vperm.slane %v1099, 1
    %v1115 = vlaneseq
    %v1116 = vshrl.u32 %v1115, 7
    %1118 = vset.pattern.permute.xlu0 %v1116
    %1119 = vperm.xlu0 %1118, %v1114
    %v1120 = vpop.permute.xlu0 %1119
    %v1121 = vlaneseq
    %v1122 = vshrl.u32 %v1121, 7
    %v1123 = vadd.s32 %v1122, 8
    %1124 = vset.pattern.permute.xlu0 %v1123
    %1125 = vperm.xlu0 %1124, %v1114
    %v1126 = vpop.permute.xlu0 %1125
    %v1127 = vperm.slane %v1099, 2
    %v1128 = vlaneseq
    %v1129 = vshrl.u32 %v1128, 7
    %1131 = vset.pattern.permute.xlu0 %v1129
    %1132 = vperm.xlu0 %1131, %v1127
    %v1133 = vpop.permute.xlu0 %1132
    %v1134 = vlaneseq
    %v1135 = vshrl.u32 %v1134, 7
    %v1136 = vadd.s32 %v1135, 8
    %1137 = vset.pattern.permute.xlu0 %v1136
    %1138 = vperm.xlu0 %1137, %v1127
    %v1139 = vpop.permute.xlu0 %1138
    %v1140 = vperm.slane %v1099, 3
    %v1141 = vlaneseq
    %v1142 = vshrl.u32 %v1141, 7
    %1144 = vset.pattern.permute.xlu0 %v1142
    %1145 = vperm.xlu0 %1144, %v1140
    %v1146 = vpop.permute.xlu0 %1145
    %v1147 = vlaneseq
    %v1148 = vshrl.u32 %v1147, 7
    %v1149 = vadd.s32 %v1148, 8
    %1150 = vset.pattern.permute.xlu0 %v1149
    %1151 = vperm.xlu0 %1150, %v1140
    %v1152 = vpop.permute.xlu0 %1151
    %v1161 = vmul.f32 %v1091, %v1107
    %v1162 = vmul.f32 %v1092, %v1113
    %v1163 = vmul.f32 %v1093, %v1120
    %v1164 = vmul.f32 %v1094, %v1126
    %v1165 = vmul.f32 %v1095, %v1133
    %v1166 = vmul.f32 %v1096, %v1139
    %v1167 = vmul.f32 %v1097, %v1146
    %v1168 = vmul.f32 %v1098, %v1152
    %1177 = vset.pattern.permute.xlu0 0
    %1178 = vperm.xlu0 %1177, %v1161
    %v1179 = vpop.permute.xlu0 %1178
    %1180 = vset.pattern.permute.xlu0 0
    %1181 = vperm.xlu0 %1180, %v1162
    %v1182 = vpop.permute.xlu0 %1181
    %1183 = vset.pattern.permute.xlu0 0
    %1184 = vperm.xlu0 %1183, %v1163
    %v1185 = vpop.permute.xlu0 %1184
    %1186 = vset.pattern.permute.xlu0 0
    %1187 = vperm.xlu0 %1186, %v1164
    %v1188 = vpop.permute.xlu0 %1187
    %1189 = vset.pattern.permute.xlu0 0
    %1190 = vperm.xlu0 %1189, %v1165
    %v1191 = vpop.permute.xlu0 %1190
    %1192 = vset.pattern.permute.xlu0 0
    %1193 = vperm.xlu0 %1192, %v1166
    %v1194 = vpop.permute.xlu0 %1193
    %1195 = vset.pattern.permute.xlu0 0
    %1196 = vperm.xlu0 %1195, %v1167
    %v1197 = vpop.permute.xlu0 %1196
    %1198 = vset.pattern.permute.xlu0 0
    %1199 = vperm.xlu0 %1198, %v1168
    %v1200 = vpop.permute.xlu0 %1199
    %v1201 = vlaneseq
    %v1202 = vand.u32 %v1201, 127
    %v1203 = vperm.slane %v1179, %v1202
    %v1204 = vadd.s32 %v1202, 4294967288
    %v1205 = vperm.slane %v1182, %v1204
    %vm1206 = vcmask 130112
    %v1207 = vsel %vm1206, %v1205, %v1203
    %v1208 = vperm.slane %v1185, %v1202
    %v1209 = vperm.slane %v1188, %v1204
    %v1210 = vsel %vm1206, %v1209, %v1208
    %v1211 = vperm.slane %v1191, %v1202
    %v1212 = vperm.slane %v1194, %v1204
    %v1213 = vsel %vm1206, %v1212, %v1211
    %v1214 = vperm.slane %v1197, %v1202
    %v1215 = vperm.slane %v1200, %v1204
    %v1216 = vsel %vm1206, %v1215, %v1214
    %vm1217 = vcmask 1041409
    %v1218 = vsel %vm1217, %v1210, %v1207
    %vm1219 = vcmask 1042434
    %v1220 = vsel %vm1219, %v1213, %v1218
    %vm1221 = vcmask 1043459
    %v1222 = vsel %vm1221, %v1216, %v1220
    %vm1224 = vcmask 125952
    %1225 = vst.msk [vmem:[#allocation7] sm:$0xf] %vm1224, %v1222
    // Predicated region
    $region54: #{tpu_custom_call.1} parent=1 // pred_check
      _
    $region55: #{tpu_custom_call.1} parent=1 // pred_check_branch
      %1227 = sbr.rel (0) target = $region57
    $region56: #{tpu_custom_call.1} parent=1 // pred_region
      %1229 = vsyncadd [#allocation6], 0
      %s1231 = sshll.u32 [#allocation7], 4
      %s1232 = int_to_ptr.vmem [resolvable:$true] %s1231
      %s1233 = sshll.u32 %s12, 4
      %s1234 = int_to_ptr.hbm [resolvable:$true] %s1233
      %1236 = dma.vmem_to_hbm [thread:$0]  %s1232, 64, %s1234, [#allocation6]
    $region57: #{tpu_custom_call.1} parent=1 // pred_fallthru
      _
    // Predicated region
    $region58: #{tpu_custom_call.1} parent=1 // pred_check
      _
    $region59: #{tpu_custom_call.1} parent=1 // pred_check_branch
      %1238 = sbr.rel (0) target = $region61
    $region60: #{tpu_custom_call.1} parent=1 // pred_region
      %1240 = dma.done [#allocation6], 64
    $region61: #{tpu_custom_call.1} parent=1 // pred_fallthru
      _
    %1241 = vsyncpa [#allocation5], 1
    %1242 = vsyncpa [#allocation6], 1

</llo_original>
